<compile_context>
chip_gen: v5e
topology: v5e:2x2
jax: 0.10.0
libtpu: 0.0.40
codegen_flags: <defaults>
</compile_context>

<pallas_src>
import functools

import jax
import jax.numpy as jnp
from jax import lax
from jax.experimental import pallas as pl
from jax.experimental.pallas import tpu as pltpu

BN_EPS = 1e-5


def _round_up(a, b):
    return (a + b - 1) // b * b


# ---------------------------------------------------------------------------
# Pass 1: conv-as-matmul + bias + ReLU, streaming per-channel sum / sumsq.
# ---------------------------------------------------------------------------
def _conv_relu_stats_kernel(x_ref, w_ref, b_ref, y_ref, sum_ref, ssq_ref, *,
                            tile_m, m_valid):
    i = pl.program_id(0)

    # MXU matmul: bf16 operands, f32 accumulate.
    y = jnp.dot(x_ref[...], w_ref[...], preferred_element_type=jnp.float32)
    y = jnp.maximum(y + b_ref[...], 0.0)            # conv bias + ReLU (f32)

    # Mask rows that are pure padding so they do not bias the batch stats.
    row = i * tile_m + lax.broadcasted_iota(jnp.int32, (tile_m, 1), 0)
    ym = jnp.where(row < m_valid, y, 0.0)

    @pl.when(i == 0)
    def _():
        sum_ref[...] = jnp.zeros_like(sum_ref)
        ssq_ref[...] = jnp.zeros_like(ssq_ref)

    sum_ref[...] += jnp.sum(ym, axis=0, keepdims=True)
    ssq_ref[...] += jnp.sum(ym * ym, axis=0, keepdims=True)

    y_ref[...] = y


# ---------------------------------------------------------------------------
# Pass 2: folded BatchNorm affine: out = y * scale + shift   (in-place on y).
# ---------------------------------------------------------------------------
def _bn_apply_kernel(y_ref, scale_ref, shift_ref, o_ref):
    o_ref[...] = y_ref[...] * scale_ref[...] + shift_ref[...]


def _im2col(x, kernel_size, stride):
    # x: [N, C, L] -> ([N*L_out, C*K], L_out), Conv1d(padding=K//2) windows.
    N, C, L = x.shape
    pad = kernel_size // 2
    xp = jnp.pad(x, ((0, 0), (0, 0), (pad, pad)))
    L_out = (L + 2 * pad - kernel_size) // stride + 1
    idx = jnp.arange(L_out)[:, None] * stride + jnp.arange(kernel_size)[None, :]
    cols = xp[:, :, idx]                           # [N, C, L_out, K]
    cols = jnp.transpose(cols, (0, 2, 1, 3))       # [N, L_out, C, K]
    return cols.reshape(N * L_out, C * kernel_size), L_out


def encoder_layer(x, w, b, gamma, beta, kernel_size, stride, tile_m=512):
    """One Conv1d -> ReLU -> BatchNorm1d layer. x: [N, C_in, L] float32."""
    N = x.shape[0]
    C_out, C_in, K = w.shape

    # im2col in bf16 (halves HBM traffic of the materialized window matrix).
    xcol, L_out = _im2col(x.astype(jnp.bfloat16), kernel_size, stride)
    M, CK = xcol.shape

    # Lane-dense padding (multiples of 128) + row-tile padding.
    ck_p = _round_up(CK, 128)
    co_p = _round_up(C_out, 128)
    tm = _round_up(min(tile_m, _round_up(M, 8)), 8)
    m_p = _round_up(M, tm)
    n_tiles = m_p // tm

    xcol_p = jnp.pad(xcol, ((0, m_p - M), (0, ck_p - CK)))
    wm_p = jnp.pad(jnp.transpose(w.reshape(C_out, CK)).astype(jnp.bfloat16),
                   ((0, ck_p - CK), (0, co_p - C_out)))
    b_p = jnp.pad(b, (0, co_p - C_out)).reshape(1, co_p)
    gamma_p = jnp.pad(gamma, (0, co_p - C_out))
    beta_p = jnp.pad(beta, (0, co_p - C_out))

    # ---- Pass 1: matmul + bias + ReLU + streaming stats --------------------
    vmem_p1 = (2 * tm * ck_p * 2 + 2 * ck_p * co_p * 2 + 2 * co_p * 4
               + 2 * tm * co_p * 4 + 4 * co_p * 4)
    cost_p1 = pl.CostEstimate(
        flops=2 * m_p * ck_p * co_p,
        transcendentals=0,
        bytes_accessed=(m_p * ck_p * 2 + ck_p * co_p * 2
                        + m_p * co_p * 4 + 2 * co_p * 4))

    y, ssum, ssq = pl.pallas_call(
        functools.partial(_conv_relu_stats_kernel, tile_m=tm, m_valid=M),
        grid=(n_tiles,),
        in_specs=[
            pl.BlockSpec((tm, ck_p), lambda i: (i, 0)),
            pl.BlockSpec((ck_p, co_p), lambda i: (0, 0)),
            pl.BlockSpec((1, co_p), lambda i: (0, 0)),
        ],
        out_specs=(
            pl.BlockSpec((tm, co_p), lambda i: (i, 0)),
            pl.BlockSpec((1, co_p), lambda i: (0, 0)),   # resident accumulator
            pl.BlockSpec((1, co_p), lambda i: (0, 0)),   # resident accumulator
        ),
        out_shape=(
            jax.ShapeDtypeStruct((m_p, co_p), jnp.float32),
            jax.ShapeDtypeStruct((1, co_p), jnp.float32),
            jax.ShapeDtypeStruct((1, co_p), jnp.float32),
        ),
        compiler_params=pltpu.CompilerParams(
            dimension_semantics=("arbitrary",),   # stats carried across tiles
            vmem_limit_bytes=min(4 * vmem_p1 + (8 << 20), 48 << 20)),
        cost_estimate=cost_p1,
    )(xcol_p, wm_p, b_p)

    # ---- Tiny per-channel batch statistics -> folded affine (plain JAX) ----
    mean = ssum[0] / M
    var = jnp.maximum(ssq[0] / M - mean * mean, 0.0)     # biased (PyTorch norm)
    scale = gamma_p * lax.rsqrt(var + BN_EPS)
    shift = beta_p - mean * scale

    # ---- Pass 2: y * scale + shift, in place on y ---------------------------
    vmem_p2 = 4 * tm * co_p * 4 + 4 * co_p * 4
    cost_p2 = pl.CostEstimate(
        flops=2 * m_p * co_p,
        transcendentals=0,
        bytes_accessed=2 * m_p * co_p * 4 + 2 * co_p * 4)

    out = pl.pallas_call(
        _bn_apply_kernel,
        grid=(n_tiles,),
        in_specs=[
            pl.BlockSpec((tm, co_p), lambda i: (i, 0)),
            pl.BlockSpec((1, co_p), lambda i: (0, 0)),
            pl.BlockSpec((1, co_p), lambda i: (0, 0)),
        ],
        out_specs=pl.BlockSpec((tm, co_p), lambda i: (i, 0)),
        out_shape=jax.ShapeDtypeStruct((m_p, co_p), jnp.float32),
        input_output_aliases={0: 0},
        compiler_params=pltpu.CompilerParams(
            dimension_semantics=("parallel",),
            vmem_limit_bytes=min(4 * vmem_p2 + (8 << 20), 48 << 20)),
        cost_estimate=cost_p2,
    )(y, scale.reshape(1, co_p), shift.reshape(1, co_p))

    # Strip padding, back to NCL: [M, C_out] -> [N, L_out, C_out] -> [N, C_out, L_out]
    out = out[:M, :C_out].reshape(N, L_out, C_out)
    return jnp.transpose(out, (0, 2, 1))


def demucs_encoder(x, params, kernel_size, stride, tile_m=512):
    """Mirrors DemucsEncoder.forward: returns (x_final, skips)."""
    skips = []
    for (w, b, gamma, beta) in params:
        x = encoder_layer(x, w, b, gamma, beta, kernel_size, stride, tile_m)
        skips.append(x)
    return x, skips


def init_params(key, in_channels, channels, kernel_size, depth):
    """Deterministic synthetic parameters matching the module's shapes."""
    params = []
    prev = in_channels
    for i in range(depth):
        out_ch = channels * 2 ** i
        key, kw, kb = jax.random.split(key, 3)
        w = 0.1 * jax.random.normal(kw, (out_ch, prev, kernel_size), jnp.float32)
        b = 0.1 * jax.random.normal(kb, (out_ch,), jnp.float32)
        gamma = jnp.ones((out_ch,), jnp.float32)   # BatchNorm1d default weight
        beta = jnp.zeros((out_ch,), jnp.float32)   # BatchNorm1d default bias
        params.append((w, b, gamma, beta))
        prev = out_ch
    return params


def _reference_layer(x, w, b, gamma, beta, kernel_size, stride):
    """Plain-JAX reference (same bf16 matmul precision) for correctness check."""
    N, C_in, L = x.shape
    C_out = w.shape[0]
    xcol, L_out = _im2col(x.astype(jnp.bfloat16), kernel_size, stride)
    wm = jnp.transpose(w.reshape(C_out, -1)).astype(jnp.bfloat16)
    y = jnp.dot(xcol, wm, preferred_element_type=jnp.float32) + b[None, :]
    y = jnp.maximum(y, 0.0)
    mean = jnp.mean(y, axis=0, keepdims=True)
    var = jnp.mean(jnp.square(y - mean), axis=0, keepdims=True)
    y = (y - mean) * lax.rsqrt(var + BN_EPS) * gamma[None, :] + beta[None, :]
    return jnp.transpose(y.reshape(N, L_out, C_out), (0, 2, 1))


if __name__ == "__main__":
    # Small, Demucs-like configuration.
    in_channels = 2      # stereo audio
    channels = 4
    kernel_size = 8
    stride = 4
    depth = 3
    batch = 2
    length = 64
    tile_m = 16          # small tile so the toy shapes exercise multi-tile grids + row masking

    key = jax.random.PRNGKey(0)
    key, kx = jax.random.split(key)
    x = jax.random.normal(kx, (batch, in_channels, length), jnp.float32)
    params = init_params(key, in_channels, channels, kernel_size, depth)

    fwd = jax.jit(functools.partial(
        demucs_encoder, kernel_size=kernel_size, stride=stride, tile_m=tile_m))

    x_out, skips = fwd(x, params)
    x_out = jax.block_until_ready(x_out)
    for s in skips:
        jax.block_until_ready(s)

    # Correctness check against a plain-JAX reference, layer by layer.
    layer_in = x
    for (w, b, g, bt), s in zip(params, skips):
        ref = _reference_layer(layer_in, w, b, g, bt, kernel_size, stride)
        err = float(jnp.max(jnp.abs(ref - s)))
        if not (err < 2e-2):
            raise AssertionError(f"kernel/reference mismatch: max abs err {err}")
        layer_in = s

    print("KERNEL_OK")
</pallas_src>

<mosaic_0001>
module attributes {stable_mosaic.version = 11 : i64} {
  func.func @_conv_relu_stats_kernel(%arg0: i32, %arg1: memref<16x128xbf16, #tpu.memory_space<vmem>>, %arg2: memref<128x128xbf16, #tpu.memory_space<vmem>>, %arg3: memref<1x128xf32, #tpu.memory_space<vmem>>, %arg4: memref<16x128xf32, #tpu.memory_space<vmem>>, %arg5: memref<1x128xf32, #tpu.memory_space<vmem>>, %arg6: memref<1x128xf32, #tpu.memory_space<vmem>>) attributes {dimension_semantics = [#tpu.dimension_semantics<arbitrary>], iteration_bounds = array<i64: 3>, scalar_prefetch = 0 : i64, scratch_operands = 0 : i64, tpu.core_type = #tpu.core_type<tc>, window_params = [{transform_indices = @transform_0, window_bounds = array<i64: 16, 128>}, {pipeline_mode = #tpu.pipeline_mode<synchronous>, transform_indices = @transform_1, window_bounds = array<i64: 128, 128>}, {pipeline_mode = #tpu.pipeline_mode<synchronous>, transform_indices = @transform_2, window_bounds = array<i64: 1, 128>}, {transform_indices = @transform_3, window_bounds = array<i64: 16, 128>}, {pipeline_mode = #tpu.pipeline_mode<synchronous>, transform_indices = @transform_4, window_bounds = array<i64: 1, 128>}, {pipeline_mode = #tpu.pipeline_mode<synchronous>, transform_indices = @transform_5, window_bounds = array<i64: 1, 128>}]} {
    %c0 = arith.constant 0 : index
    %c0_0 = arith.constant 0 : index
    %0 = vector.load %arg1[%c0, %c0_0] : memref<16x128xbf16, #tpu.memory_space<vmem>>, vector<16x128xbf16>
    %c0_1 = arith.constant 0 : index
    %c0_2 = arith.constant 0 : index
    %1 = vector.load %arg2[%c0_1, %c0_2] : memref<128x128xbf16, #tpu.memory_space<vmem>>, vector<128x128xbf16>
    %cst = arith.constant dense<0.000000e+00> : vector<16x128xf32>
    %2 = tpu.matmul %0, %1, %cst {dimension_numbers = #tpu.dot_dimension_numbers<[1], [0], [0], [1], [0, 0, 1, 1], [], []>} : vector<16x128xbf16>, vector<128x128xbf16>, vector<16x128xf32> -> vector<16x128xf32>
    %c0_3 = arith.constant 0 : index
    %c0_4 = arith.constant 0 : index
    %3 = vector.load %arg3[%c0_3, %c0_4] : memref<1x128xf32, #tpu.memory_space<vmem>>, vector<1x128xf32>
    %4 = vector.broadcast %3 : vector<1x128xf32> to vector<16x128xf32>
    %5 = arith.addf %2, %4 : vector<16x128xf32>
    %cst_5 = arith.constant 0.000000e+00 : f32
    %6 = vector.broadcast %cst_5 : f32 to vector<16x128xf32>
    %7 = arith.maximumf %5, %6 : vector<16x128xf32>
    %c16_i32 = arith.constant 16 : i32
    %8 = arith.muli %arg0, %c16_i32 : i32
    %9 = tpu.iota {dimensions = array<i32: 0>} : vector<16x1xi32>
    %10 = vector.broadcast %8 : i32 to vector<16x1xi32>
    %11 = arith.addi %10, %9 : vector<16x1xi32>
    %c34_i32 = arith.constant 34 : i32
    %12 = vector.broadcast %c34_i32 : i32 to vector<16x1xi32>
    %13 = arith.cmpi slt, %11, %12 : vector<16x1xi32>
    %cst_6 = arith.constant 0.000000e+00 : f32
    %14 = vector.shape_cast %13 : vector<16x1xi1> to vector<16x1xi1>
    %15 = vector.broadcast %14 : vector<16x1xi1> to vector<16x128xi1>
    %16 = vector.broadcast %cst_6 : f32 to vector<16x128xf32>
    %17 = arith.select %15, %7, %16 : vector<16x128xi1>, vector<16x128xf32>
    %c0_i32 = arith.constant 0 : i32
    %18 = arith.cmpi eq, %arg0, %c0_i32 : i32
    %19 = arith.extui %18 : i1 to i32
    %c0_i32_7 = arith.constant 0 : i32
    %20 = arith.cmpi ne, %19, %c0_i32_7 : i32
    scf.if %20 {
      %cst_20 = arith.constant 0.000000e+00 : f32
      %33 = vector.broadcast %cst_20 : f32 to vector<1x128xf32>
      %c0_21 = arith.constant 0 : index
      %c0_22 = arith.constant 0 : index
      %34 = vector.load %arg5[%c0_21, %c0_22] : memref<1x128xf32, #tpu.memory_space<vmem>>, vector<1x128xf32>
      tpu.vector_store %arg5[%c0_21, %c0_22], %33 {strides = array<i32>} : memref<1x128xf32, #tpu.memory_space<vmem>>, vector<1x128xf32>,
      %cst_23 = arith.constant 0.000000e+00 : f32
      %35 = vector.broadcast %cst_23 : f32 to vector<1x128xf32>
      %c0_24 = arith.constant 0 : index
      %c0_25 = arith.constant 0 : index
      %36 = vector.load %arg6[%c0_24, %c0_25] : memref<1x128xf32, #tpu.memory_space<vmem>>, vector<1x128xf32>
      tpu.vector_store %arg6[%c0_24, %c0_25], %35 {strides = array<i32>} : memref<1x128xf32, #tpu.memory_space<vmem>>, vector<1x128xf32>,
    } else {
    }
    %c0_8 = arith.constant 0 : index
    %c0_9 = arith.constant 0 : index
    %21 = vector.load %arg5[%c0_8, %c0_9] : memref<1x128xf32, #tpu.memory_space<vmem>>, vector<1x128xf32>
    %cst_10 = arith.constant dense<0.000000e+00> : vector<128xf32>
    %22 = vector.multi_reduction <add>, %17, %cst_10 [0] : vector<16x128xf32> to vector<128xf32>
    %23 = vector.shape_cast %22 : vector<128xf32> to vector<1x128xf32>
    %24 = arith.addf %21, %23 : vector<1x128xf32>
    %c0_11 = arith.constant 0 : index
    %c0_12 = arith.constant 0 : index
    %25 = vector.load %arg5[%c0_11, %c0_12] : memref<1x128xf32, #tpu.memory_space<vmem>>, vector<1x128xf32>
    tpu.vector_store %arg5[%c0_11, %c0_12], %24 {strides = array<i32>} : memref<1x128xf32, #tpu.memory_space<vmem>>, vector<1x128xf32>,
    %c0_13 = arith.constant 0 : index
    %c0_14 = arith.constant 0 : index
    %26 = vector.load %arg6[%c0_13, %c0_14] : memref<1x128xf32, #tpu.memory_space<vmem>>, vector<1x128xf32>
    %27 = arith.mulf %17, %17 : vector<16x128xf32>
    %cst_15 = arith.constant dense<0.000000e+00> : vector<128xf32>
    %28 = vector.multi_reduction <add>, %27, %cst_15 [0] : vector<16x128xf32> to vector<128xf32>
    %29 = vector.shape_cast %28 : vector<128xf32> to vector<1x128xf32>
    %30 = arith.addf %26, %29 : vector<1x128xf32>
    %c0_16 = arith.constant 0 : index
    %c0_17 = arith.constant 0 : index
    %31 = vector.load %arg6[%c0_16, %c0_17] : memref<1x128xf32, #tpu.memory_space<vmem>>, vector<1x128xf32>
    tpu.vector_store %arg6[%c0_16, %c0_17], %30 {strides = array<i32>} : memref<1x128xf32, #tpu.memory_space<vmem>>, vector<1x128xf32>,
    %c0_18 = arith.constant 0 : index
    %c0_19 = arith.constant 0 : index
    %32 = vector.load %arg4[%c0_18, %c0_19] : memref<16x128xf32, #tpu.memory_space<vmem>>, vector<16x128xf32>
    tpu.vector_store %arg4[%c0_18, %c0_19], %7 {strides = array<i32>} : memref<16x128xf32, #tpu.memory_space<vmem>>, vector<16x128xf32>,
    return
  }
  func.func @transform_0(%arg0: i32) -> (i32, i32) {
    %c0_i32 = arith.constant 0 : i32
    %c0_i32_0 = arith.constant 0 : i32
    return %arg0, %c0_i32 : i32, i32
  }
  func.func @transform_1(%arg0: i32) -> (i32, i32) {
    %c0_i32 = arith.constant 0 : i32
    %c0_i32_0 = arith.constant 0 : i32
    %c0_i32_1 = arith.constant 0 : i32
    return %c0_i32, %c0_i32_0 : i32, i32
  }
  func.func @transform_2(%arg0: i32) -> (i32, i32) {
    %c0_i32 = arith.constant 0 : i32
    %c0_i32_0 = arith.constant 0 : i32
    %c0_i32_1 = arith.constant 0 : i32
    return %c0_i32, %c0_i32_0 : i32, i32
  }
  func.func @transform_3(%arg0: i32) -> (i32, i32) {
    %c0_i32 = arith.constant 0 : i32
    %c0_i32_0 = arith.constant 0 : i32
    return %arg0, %c0_i32 : i32, i32
  }
  func.func @transform_4(%arg0: i32) -> (i32, i32) {
    %c0_i32 = arith.constant 0 : i32
    %c0_i32_0 = arith.constant 0 : i32
    %c0_i32_1 = arith.constant 0 : i32
    return %c0_i32, %c0_i32_0 : i32, i32
  }
  func.func @transform_5(%arg0: i32) -> (i32, i32) {
    %c0_i32 = arith.constant 0 : i32
    %c0_i32_0 = arith.constant 0 : i32
    %c0_i32_1 = arith.constant 0 : i32
    return %c0_i32, %c0_i32_0 : i32, i32
  }
}

module attributes {stable_mosaic.version = 11 : i64} {
  func.func @_bn_apply_kernel(%arg0: i32, %arg1: memref<16x128xf32, #tpu.memory_space<vmem>>, %arg2: memref<1x128xf32, #tpu.memory_space<vmem>>, %arg3: memref<1x128xf32, #tpu.memory_space<vmem>>, %arg4: memref<16x128xf32, #tpu.memory_space<vmem>>) attributes {dimension_semantics = [#tpu.dimension_semantics<parallel>], iteration_bounds = array<i64: 3>, scalar_prefetch = 0 : i64, scratch_operands = 0 : i64, tpu.core_type = #tpu.core_type<tc>, window_params = [{transform_indices = @transform_0, window_bounds = array<i64: 16, 128>}, {pipeline_mode = #tpu.pipeline_mode<synchronous>, transform_indices = @transform_1, window_bounds = array<i64: 1, 128>}, {pipeline_mode = #tpu.pipeline_mode<synchronous>, transform_indices = @transform_2, window_bounds = array<i64: 1, 128>}, {transform_indices = @transform_3, window_bounds = array<i64: 16, 128>}]} {
    %c0 = arith.constant 0 : index
    %c0_0 = arith.constant 0 : index
    %0 = vector.load %arg1[%c0, %c0_0] : memref<16x128xf32, #tpu.memory_space<vmem>>, vector<16x128xf32>
    %c0_1 = arith.constant 0 : index
    %c0_2 = arith.constant 0 : index
    %1 = vector.load %arg2[%c0_1, %c0_2] : memref<1x128xf32, #tpu.memory_space<vmem>>, vector<1x128xf32>
    %2 = vector.broadcast %1 : vector<1x128xf32> to vector<16x128xf32>
    %3 = arith.mulf %0, %2 : vector<16x128xf32>
    %c0_3 = arith.constant 0 : index
    %c0_4 = arith.constant 0 : index
    %4 = vector.load %arg3[%c0_3, %c0_4] : memref<1x128xf32, #tpu.memory_space<vmem>>, vector<1x128xf32>
    %5 = vector.broadcast %4 : vector<1x128xf32> to vector<16x128xf32>
    %6 = arith.addf %3, %5 : vector<16x128xf32>
    %c0_5 = arith.constant 0 : index
    %c0_6 = arith.constant 0 : index
    %7 = vector.load %arg4[%c0_5, %c0_6] : memref<16x128xf32, #tpu.memory_space<vmem>>, vector<16x128xf32>
    tpu.vector_store %arg4[%c0_5, %c0_6], %6 {strides = array<i32>} : memref<16x128xf32, #tpu.memory_space<vmem>>, vector<16x128xf32>,
    return
  }
  func.func @transform_0(%arg0: i32) -> (i32, i32) {
    %c0_i32 = arith.constant 0 : i32
    %c0_i32_0 = arith.constant 0 : i32
    return %arg0, %c0_i32 : i32, i32
  }
  func.func @transform_1(%arg0: i32) -> (i32, i32) {
    %c0_i32 = arith.constant 0 : i32
    %c0_i32_0 = arith.constant 0 : i32
    %c0_i32_1 = arith.constant 0 : i32
    return %c0_i32, %c0_i32_0 : i32, i32
  }
  func.func @transform_2(%arg0: i32) -> (i32, i32) {
    %c0_i32 = arith.constant 0 : i32
    %c0_i32_0 = arith.constant 0 : i32
    %c0_i32_1 = arith.constant 0 : i32
    return %c0_i32, %c0_i32_0 : i32, i32
  }
  func.func @transform_3(%arg0: i32) -> (i32, i32) {
    %c0_i32 = arith.constant 0 : i32
    %c0_i32_0 = arith.constant 0 : i32
    return %arg0, %c0_i32 : i32, i32
  }
}

module attributes {stable_mosaic.version = 11 : i64} {
  func.func @_conv_relu_stats_kernel(%arg0: i32, %arg1: memref<16x128xbf16, #tpu.memory_space<vmem>>, %arg2: memref<128x128xbf16, #tpu.memory_space<vmem>>, %arg3: memref<1x128xf32, #tpu.memory_space<vmem>>, %arg4: memref<16x128xf32, #tpu.memory_space<vmem>>, %arg5: memref<1x128xf32, #tpu.memory_space<vmem>>, %arg6: memref<1x128xf32, #tpu.memory_space<vmem>>) attributes {dimension_semantics = [#tpu.dimension_semantics<arbitrary>], iteration_bounds = array<i64: 1>, scalar_prefetch = 0 : i64, scratch_operands = 0 : i64, tpu.core_type = #tpu.core_type<tc>, window_params = [{transform_indices = @transform_0, window_bounds = array<i64: 16, 128>}, {pipeline_mode = #tpu.pipeline_mode<synchronous>, transform_indices = @transform_1, window_bounds = array<i64: 128, 128>}, {pipeline_mode = #tpu.pipeline_mode<synchronous>, transform_indices = @transform_2, window_bounds = array<i64: 1, 128>}, {transform_indices = @transform_3, window_bounds = array<i64: 16, 128>}, {pipeline_mode = #tpu.pipeline_mode<synchronous>, transform_indices = @transform_4, window_bounds = array<i64: 1, 128>}, {pipeline_mode = #tpu.pipeline_mode<synchronous>, transform_indices = @transform_5, window_bounds = array<i64: 1, 128>}]} {
    %c0 = arith.constant 0 : index
    %c0_0 = arith.constant 0 : index
    %0 = vector.load %arg1[%c0, %c0_0] : memref<16x128xbf16, #tpu.memory_space<vmem>>, vector<16x128xbf16>
    %c0_1 = arith.constant 0 : index
    %c0_2 = arith.constant 0 : index
    %1 = vector.load %arg2[%c0_1, %c0_2] : memref<128x128xbf16, #tpu.memory_space<vmem>>, vector<128x128xbf16>
    %cst = arith.constant dense<0.000000e+00> : vector<16x128xf32>
    %2 = tpu.matmul %0, %1, %cst {dimension_numbers = #tpu.dot_dimension_numbers<[1], [0], [0], [1], [0, 0, 1, 1], [], []>} : vector<16x128xbf16>, vector<128x128xbf16>, vector<16x128xf32> -> vector<16x128xf32>
    %c0_3 = arith.constant 0 : index
    %c0_4 = arith.constant 0 : index
    %3 = vector.load %arg3[%c0_3, %c0_4] : memref<1x128xf32, #tpu.memory_space<vmem>>, vector<1x128xf32>
    %4 = vector.broadcast %3 : vector<1x128xf32> to vector<16x128xf32>
    %5 = arith.addf %2, %4 : vector<16x128xf32>
    %cst_5 = arith.constant 0.000000e+00 : f32
    %6 = vector.broadcast %cst_5 : f32 to vector<16x128xf32>
    %7 = arith.maximumf %5, %6 : vector<16x128xf32>
    %c16_i32 = arith.constant 16 : i32
    %8 = arith.muli %arg0, %c16_i32 : i32
    %9 = tpu.iota {dimensions = array<i32: 0>} : vector<16x1xi32>
    %10 = vector.broadcast %8 : i32 to vector<16x1xi32>
    %11 = arith.addi %10, %9 : vector<16x1xi32>
    %c10_i32 = arith.constant 10 : i32
    %12 = vector.broadcast %c10_i32 : i32 to vector<16x1xi32>
    %13 = arith.cmpi slt, %11, %12 : vector<16x1xi32>
    %cst_6 = arith.constant 0.000000e+00 : f32
    %14 = vector.shape_cast %13 : vector<16x1xi1> to vector<16x1xi1>
    %15 = vector.broadcast %14 : vector<16x1xi1> to vector<16x128xi1>
    %16 = vector.broadcast %cst_6 : f32 to vector<16x128xf32>
    %17 = arith.select %15, %7, %16 : vector<16x128xi1>, vector<16x128xf32>
    %c0_i32 = arith.constant 0 : i32
    %18 = arith.cmpi eq, %arg0, %c0_i32 : i32
    %19 = arith.extui %18 : i1 to i32
    %c0_i32_7 = arith.constant 0 : i32
    %20 = arith.cmpi ne, %19, %c0_i32_7 : i32
    scf.if %20 {
      %cst_20 = arith.constant 0.000000e+00 : f32
      %33 = vector.broadcast %cst_20 : f32 to vector<1x128xf32>
      %c0_21 = arith.constant 0 : index
      %c0_22 = arith.constant 0 : index
      %34 = vector.load %arg5[%c0_21, %c0_22] : memref<1x128xf32, #tpu.memory_space<vmem>>, vector<1x128xf32>
      tpu.vector_store %arg5[%c0_21, %c0_22], %33 {strides = array<i32>} : memref<1x128xf32, #tpu.memory_space<vmem>>, vector<1x128xf32>,
      %cst_23 = arith.constant 0.000000e+00 : f32
      %35 = vector.broadcast %cst_23 : f32 to vector<1x128xf32>
      %c0_24 = arith.constant 0 : index
      %c0_25 = arith.constant 0 : index
      %36 = vector.load %arg6[%c0_24, %c0_25] : memref<1x128xf32, #tpu.memory_space<vmem>>, vector<1x128xf32>
      tpu.vector_store %arg6[%c0_24, %c0_25], %35 {strides = array<i32>} : memref<1x128xf32, #tpu.memory_space<vmem>>, vector<1x128xf32>,
    } else {
    }
    %c0_8 = arith.constant 0 : index
    %c0_9 = arith.constant 0 : index
    %21 = vector.load %arg5[%c0_8, %c0_9] : memref<1x128xf32, #tpu.memory_space<vmem>>, vector<1x128xf32>
    %cst_10 = arith.constant dense<0.000000e+00> : vector<128xf32>
    %22 = vector.multi_reduction <add>, %17, %cst_10 [0] : vector<16x128xf32> to vector<128xf32>
    %23 = vector.shape_cast %22 : vector<128xf32> to vector<1x128xf32>
    %24 = arith.addf %21, %23 : vector<1x128xf32>
    %c0_11 = arith.constant 0 : index
    %c0_12 = arith.constant 0 : index
    %25 = vector.load %arg5[%c0_11, %c0_12] : memref<1x128xf32, #tpu.memory_space<vmem>>, vector<1x128xf32>
    tpu.vector_store %arg5[%c0_11, %c0_12], %24 {strides = array<i32>} : memref<1x128xf32, #tpu.memory_space<vmem>>, vector<1x128xf32>,
    %c0_13 = arith.constant 0 : index
    %c0_14 = arith.constant 0 : index
    %26 = vector.load %arg6[%c0_13, %c0_14] : memref<1x128xf32, #tpu.memory_space<vmem>>, vector<1x128xf32>
    %27 = arith.mulf %17, %17 : vector<16x128xf32>
    %cst_15 = arith.constant dense<0.000000e+00> : vector<128xf32>
    %28 = vector.multi_reduction <add>, %27, %cst_15 [0] : vector<16x128xf32> to vector<128xf32>
    %29 = vector.shape_cast %28 : vector<128xf32> to vector<1x128xf32>
    %30 = arith.addf %26, %29 : vector<1x128xf32>
    %c0_16 = arith.constant 0 : index
    %c0_17 = arith.constant 0 : index
    %31 = vector.load %arg6[%c0_16, %c0_17] : memref<1x128xf32, #tpu.memory_space<vmem>>, vector<1x128xf32>
    tpu.vector_store %arg6[%c0_16, %c0_17], %30 {strides = array<i32>} : memref<1x128xf32, #tpu.memory_space<vmem>>, vector<1x128xf32>,
    %c0_18 = arith.constant 0 : index
    %c0_19 = arith.constant 0 : index
    %32 = vector.load %arg4[%c0_18, %c0_19] : memref<16x128xf32, #tpu.memory_space<vmem>>, vector<16x128xf32>
    tpu.vector_store %arg4[%c0_18, %c0_19], %7 {strides = array<i32>} : memref<16x128xf32, #tpu.memory_space<vmem>>, vector<16x128xf32>,
    return
  }
  func.func @transform_0(%arg0: i32) -> (i32, i32) {
    %c0_i32 = arith.constant 0 : i32
    %c0_i32_0 = arith.constant 0 : i32
    return %arg0, %c0_i32 : i32, i32
  }
  func.func @transform_1(%arg0: i32) -> (i32, i32) {
    %c0_i32 = arith.constant 0 : i32
    %c0_i32_0 = arith.constant 0 : i32
    %c0_i32_1 = arith.constant 0 : i32
    return %c0_i32, %c0_i32_0 : i32, i32
  }
  func.func @transform_2(%arg0: i32) -> (i32, i32) {
    %c0_i32 = arith.constant 0 : i32
    %c0_i32_0 = arith.constant 0 : i32
    %c0_i32_1 = arith.constant 0 : i32
    return %c0_i32, %c0_i32_0 : i32, i32
  }
  func.func @transform_3(%arg0: i32) -> (i32, i32) {
    %c0_i32 = arith.constant 0 : i32
    %c0_i32_0 = arith.constant 0 : i32
    return %arg0, %c0_i32 : i32, i32
  }
  func.func @transform_4(%arg0: i32) -> (i32, i32) {
    %c0_i32 = arith.constant 0 : i32
    %c0_i32_0 = arith.constant 0 : i32
    %c0_i32_1 = arith.constant 0 : i32
    return %c0_i32, %c0_i32_0 : i32, i32
  }
  func.func @transform_5(%arg0: i32) -> (i32, i32) {
    %c0_i32 = arith.constant 0 : i32
    %c0_i32_0 = arith.constant 0 : i32
    %c0_i32_1 = arith.constant 0 : i32
    return %c0_i32, %c0_i32_0 : i32, i32
  }
}

module attributes {stable_mosaic.version = 11 : i64} {
  func.func @_bn_apply_kernel(%arg0: i32, %arg1: memref<16x128xf32, #tpu.memory_space<vmem>>, %arg2: memref<1x128xf32, #tpu.memory_space<vmem>>, %arg3: memref<1x128xf32, #tpu.memory_space<vmem>>, %arg4: memref<16x128xf32, #tpu.memory_space<vmem>>) attributes {dimension_semantics = [#tpu.dimension_semantics<parallel>], iteration_bounds = array<i64: 1>, scalar_prefetch = 0 : i64, scratch_operands = 0 : i64, tpu.core_type = #tpu.core_type<tc>, window_params = [{transform_indices = @transform_0, window_bounds = array<i64: 16, 128>}, {pipeline_mode = #tpu.pipeline_mode<synchronous>, transform_indices = @transform_1, window_bounds = array<i64: 1, 128>}, {pipeline_mode = #tpu.pipeline_mode<synchronous>, transform_indices = @transform_2, window_bounds = array<i64: 1, 128>}, {transform_indices = @transform_3, window_bounds = array<i64: 16, 128>}]} {
    %c0 = arith.constant 0 : index
    %c0_0 = arith.constant 0 : index
    %0 = vector.load %arg1[%c0, %c0_0] : memref<16x128xf32, #tpu.memory_space<vmem>>, vector<16x128xf32>
    %c0_1 = arith.constant 0 : index
    %c0_2 = arith.constant 0 : index
    %1 = vector.load %arg2[%c0_1, %c0_2] : memref<1x128xf32, #tpu.memory_space<vmem>>, vector<1x128xf32>
    %2 = vector.broadcast %1 : vector<1x128xf32> to vector<16x128xf32>
    %3 = arith.mulf %0, %2 : vector<16x128xf32>
    %c0_3 = arith.constant 0 : index
    %c0_4 = arith.constant 0 : index
    %4 = vector.load %arg3[%c0_3, %c0_4] : memref<1x128xf32, #tpu.memory_space<vmem>>, vector<1x128xf32>
    %5 = vector.broadcast %4 : vector<1x128xf32> to vector<16x128xf32>
    %6 = arith.addf %3, %5 : vector<16x128xf32>
    %c0_5 = arith.constant 0 : index
    %c0_6 = arith.constant 0 : index
    %7 = vector.load %arg4[%c0_5, %c0_6] : memref<16x128xf32, #tpu.memory_space<vmem>>, vector<16x128xf32>
    tpu.vector_store %arg4[%c0_5, %c0_6], %6 {strides = array<i32>} : memref<16x128xf32, #tpu.memory_space<vmem>>, vector<16x128xf32>,
    return
  }
  func.func @transform_0(%arg0: i32) -> (i32, i32) {
    %c0_i32 = arith.constant 0 : i32
    %c0_i32_0 = arith.constant 0 : i32
    return %arg0, %c0_i32 : i32, i32
  }
  func.func @transform_1(%arg0: i32) -> (i32, i32) {
    %c0_i32 = arith.constant 0 : i32
    %c0_i32_0 = arith.constant 0 : i32
    %c0_i32_1 = arith.constant 0 : i32
    return %c0_i32, %c0_i32_0 : i32, i32
  }
  func.func @transform_2(%arg0: i32) -> (i32, i32) {
    %c0_i32 = arith.constant 0 : i32
    %c0_i32_0 = arith.constant 0 : i32
    %c0_i32_1 = arith.constant 0 : i32
    return %c0_i32, %c0_i32_0 : i32, i32
  }
  func.func @transform_3(%arg0: i32) -> (i32, i32) {
    %c0_i32 = arith.constant 0 : i32
    %c0_i32_0 = arith.constant 0 : i32
    return %arg0, %c0_i32 : i32, i32
  }
}

module attributes {stable_mosaic.version = 11 : i64} {
  func.func @_bn_apply_kernel(%arg0: i32, %arg1: memref<8x128xf32, #tpu.memory_space<vmem>>, %arg2: memref<1x128xf32, #tpu.memory_space<vmem>>, %arg3: memref<1x128xf32, #tpu.memory_space<vmem>>, %arg4: memref<8x128xf32, #tpu.memory_space<vmem>>) attributes {dimension_semantics = [#tpu.dimension_semantics<parallel>], iteration_bounds = array<i64: 1>, scalar_prefetch = 0 : i64, scratch_operands = 0 : i64, tpu.core_type = #tpu.core_type<tc>, window_params = [{transform_indices = @transform_0, window_bounds = array<i64: 8, 128>}, {pipeline_mode = #tpu.pipeline_mode<synchronous>, transform_indices = @transform_1, window_bounds = array<i64: 1, 128>}, {pipeline_mode = #tpu.pipeline_mode<synchronous>, transform_indices = @transform_2, window_bounds = array<i64: 1, 128>}, {transform_indices = @transform_3, window_bounds = array<i64: 8, 128>}]} {
    %c0 = arith.constant 0 : index
    %c0_0 = arith.constant 0 : index
    %0 = vector.load %arg1[%c0, %c0_0] : memref<8x128xf32, #tpu.memory_space<vmem>>, vector<8x128xf32>
    %c0_1 = arith.constant 0 : index
    %c0_2 = arith.constant 0 : index
    %1 = vector.load %arg2[%c0_1, %c0_2] : memref<1x128xf32, #tpu.memory_space<vmem>>, vector<1x128xf32>
    %2 = vector.broadcast %1 : vector<1x128xf32> to vector<8x128xf32>
    %3 = arith.mulf %0, %2 : vector<8x128xf32>
    %c0_3 = arith.constant 0 : index
    %c0_4 = arith.constant 0 : index
    %4 = vector.load %arg3[%c0_3, %c0_4] : memref<1x128xf32, #tpu.memory_space<vmem>>, vector<1x128xf32>
    %5 = vector.broadcast %4 : vector<1x128xf32> to vector<8x128xf32>
    %6 = arith.addf %3, %5 : vector<8x128xf32>
    %c0_5 = arith.constant 0 : index
    %c0_6 = arith.constant 0 : index
    %7 = vector.load %arg4[%c0_5, %c0_6] : memref<8x128xf32, #tpu.memory_space<vmem>>, vector<8x128xf32>
    tpu.vector_store %arg4[%c0_5, %c0_6], %6 {strides = array<i32>} : memref<8x128xf32, #tpu.memory_space<vmem>>, vector<8x128xf32>,
    return
  }
  func.func @transform_0(%arg0: i32) -> (i32, i32) {
    %c0_i32 = arith.constant 0 : i32
    %c0_i32_0 = arith.constant 0 : i32
    return %arg0, %c0_i32 : i32, i32
  }
  func.func @transform_1(%arg0: i32) -> (i32, i32) {
    %c0_i32 = arith.constant 0 : i32
    %c0_i32_0 = arith.constant 0 : i32
    %c0_i32_1 = arith.constant 0 : i32
    return %c0_i32, %c0_i32_0 : i32, i32
  }
  func.func @transform_2(%arg0: i32) -> (i32, i32) {
    %c0_i32 = arith.constant 0 : i32
    %c0_i32_0 = arith.constant 0 : i32
    %c0_i32_1 = arith.constant 0 : i32
    return %c0_i32, %c0_i32_0 : i32, i32
  }
  func.func @transform_3(%arg0: i32) -> (i32, i32) {
    %c0_i32 = arith.constant 0 : i32
    %c0_i32_0 = arith.constant 0 : i32
    return %arg0, %c0_i32 : i32, i32
  }
}

module attributes {stable_mosaic.version = 11 : i64} {
  func.func @_conv_relu_stats_kernel(%arg0: i32, %arg1: memref<8x128xbf16, #tpu.memory_space<vmem>>, %arg2: memref<128x128xbf16, #tpu.memory_space<vmem>>, %arg3: memref<1x128xf32, #tpu.memory_space<vmem>>, %arg4: memref<8x128xf32, #tpu.memory_space<vmem>>, %arg5: memref<1x128xf32, #tpu.memory_space<vmem>>, %arg6: memref<1x128xf32, #tpu.memory_space<vmem>>) attributes {dimension_semantics = [#tpu.dimension_semantics<arbitrary>], iteration_bounds = array<i64: 1>, scalar_prefetch = 0 : i64, scratch_operands = 0 : i64, tpu.core_type = #tpu.core_type<tc>, window_params = [{transform_indices = @transform_0, window_bounds = array<i64: 8, 128>}, {pipeline_mode = #tpu.pipeline_mode<synchronous>, transform_indices = @transform_1, window_bounds = array<i64: 128, 128>}, {pipeline_mode = #tpu.pipeline_mode<synchronous>, transform_indices = @transform_2, window_bounds = array<i64: 1, 128>}, {transform_indices = @transform_3, window_bounds = array<i64: 8, 128>}, {pipeline_mode = #tpu.pipeline_mode<synchronous>, transform_indices = @transform_4, window_bounds = array<i64: 1, 128>}, {pipeline_mode = #tpu.pipeline_mode<synchronous>, transform_indices = @transform_5, window_bounds = array<i64: 1, 128>}]} {
    %c0 = arith.constant 0 : index
    %c0_0 = arith.constant 0 : index
    %0 = vector.load %arg1[%c0, %c0_0] : memref<8x128xbf16, #tpu.memory_space<vmem>>, vector<8x128xbf16>
    %c0_1 = arith.constant 0 : index
    %c0_2 = arith.constant 0 : index
    %1 = vector.load %arg2[%c0_1, %c0_2] : memref<128x128xbf16, #tpu.memory_space<vmem>>, vector<128x128xbf16>
    %cst = arith.constant dense<0.000000e+00> : vector<8x128xf32>
    %2 = tpu.matmul %0, %1, %cst {dimension_numbers = #tpu.dot_dimension_numbers<[1], [0], [0], [1], [0, 0, 1, 1], [], []>} : vector<8x128xbf16>, vector<128x128xbf16>, vector<8x128xf32> -> vector<8x128xf32>
    %c0_3 = arith.constant 0 : index
    %c0_4 = arith.constant 0 : index
    %3 = vector.load %arg3[%c0_3, %c0_4] : memref<1x128xf32, #tpu.memory_space<vmem>>, vector<1x128xf32>
    %4 = vector.broadcast %3 : vector<1x128xf32> to vector<8x128xf32>
    %5 = arith.addf %2, %4 : vector<8x128xf32>
    %cst_5 = arith.constant 0.000000e+00 : f32
    %6 = vector.broadcast %cst_5 : f32 to vector<8x128xf32>
    %7 = arith.maximumf %5, %6 : vector<8x128xf32>
    %c8_i32 = arith.constant 8 : i32
    %8 = arith.muli %arg0, %c8_i32 : i32
    %9 = tpu.iota {dimensions = array<i32: 0>} : vector<8x1xi32>
    %10 = vector.broadcast %8 : i32 to vector<8x1xi32>
    %11 = arith.addi %10, %9 : vector<8x1xi32>
    %c4_i32 = arith.constant 4 : i32
    %12 = vector.broadcast %c4_i32 : i32 to vector<8x1xi32>
    %13 = arith.cmpi slt, %11, %12 : vector<8x1xi32>
    %cst_6 = arith.constant 0.000000e+00 : f32
    %14 = vector.shape_cast %13 : vector<8x1xi1> to vector<8x1xi1>
    %15 = vector.broadcast %14 : vector<8x1xi1> to vector<8x128xi1>
    %16 = vector.broadcast %cst_6 : f32 to vector<8x128xf32>
    %17 = arith.select %15, %7, %16 : vector<8x128xi1>, vector<8x128xf32>
    %c0_i32 = arith.constant 0 : i32
    %18 = arith.cmpi eq, %arg0, %c0_i32 : i32
    %19 = arith.extui %18 : i1 to i32
    %c0_i32_7 = arith.constant 0 : i32
    %20 = arith.cmpi ne, %19, %c0_i32_7 : i32
    scf.if %20 {
      %cst_20 = arith.constant 0.000000e+00 : f32
      %33 = vector.broadcast %cst_20 : f32 to vector<1x128xf32>
      %c0_21 = arith.constant 0 : index
      %c0_22 = arith.constant 0 : index
      %34 = vector.load %arg5[%c0_21, %c0_22] : memref<1x128xf32, #tpu.memory_space<vmem>>, vector<1x128xf32>
      tpu.vector_store %arg5[%c0_21, %c0_22], %33 {strides = array<i32>} : memref<1x128xf32, #tpu.memory_space<vmem>>, vector<1x128xf32>,
      %cst_23 = arith.constant 0.000000e+00 : f32
      %35 = vector.broadcast %cst_23 : f32 to vector<1x128xf32>
      %c0_24 = arith.constant 0 : index
      %c0_25 = arith.constant 0 : index
      %36 = vector.load %arg6[%c0_24, %c0_25] : memref<1x128xf32, #tpu.memory_space<vmem>>, vector<1x128xf32>
      tpu.vector_store %arg6[%c0_24, %c0_25], %35 {strides = array<i32>} : memref<1x128xf32, #tpu.memory_space<vmem>>, vector<1x128xf32>,
    } else {
    }
    %c0_8 = arith.constant 0 : index
    %c0_9 = arith.constant 0 : index
    %21 = vector.load %arg5[%c0_8, %c0_9] : memref<1x128xf32, #tpu.memory_space<vmem>>, vector<1x128xf32>
    %cst_10 = arith.constant dense<0.000000e+00> : vector<128xf32>
    %22 = vector.multi_reduction <add>, %17, %cst_10 [0] : vector<8x128xf32> to vector<128xf32>
    %23 = vector.shape_cast %22 : vector<128xf32> to vector<1x128xf32>
    %24 = arith.addf %21, %23 : vector<1x128xf32>
    %c0_11 = arith.constant 0 : index
    %c0_12 = arith.constant 0 : index
    %25 = vector.load %arg5[%c0_11, %c0_12] : memref<1x128xf32, #tpu.memory_space<vmem>>, vector<1x128xf32>
    tpu.vector_store %arg5[%c0_11, %c0_12], %24 {strides = array<i32>} : memref<1x128xf32, #tpu.memory_space<vmem>>, vector<1x128xf32>,
    %c0_13 = arith.constant 0 : index
    %c0_14 = arith.constant 0 : index
    %26 = vector.load %arg6[%c0_13, %c0_14] : memref<1x128xf32, #tpu.memory_space<vmem>>, vector<1x128xf32>
    %27 = arith.mulf %17, %17 : vector<8x128xf32>
    %cst_15 = arith.constant dense<0.000000e+00> : vector<128xf32>
    %28 = vector.multi_reduction <add>, %27, %cst_15 [0] : vector<8x128xf32> to vector<128xf32>
    %29 = vector.shape_cast %28 : vector<128xf32> to vector<1x128xf32>
    %30 = arith.addf %26, %29 : vector<1x128xf32>
    %c0_16 = arith.constant 0 : index
    %c0_17 = arith.constant 0 : index
    %31 = vector.load %arg6[%c0_16, %c0_17] : memref<1x128xf32, #tpu.memory_space<vmem>>, vector<1x128xf32>
    tpu.vector_store %arg6[%c0_16, %c0_17], %30 {strides = array<i32>} : memref<1x128xf32, #tpu.memory_space<vmem>>, vector<1x128xf32>,
    %c0_18 = arith.constant 0 : index
    %c0_19 = arith.constant 0 : index
    %32 = vector.load %arg4[%c0_18, %c0_19] : memref<8x128xf32, #tpu.memory_space<vmem>>, vector<8x128xf32>
    tpu.vector_store %arg4[%c0_18, %c0_19], %7 {strides = array<i32>} : memref<8x128xf32, #tpu.memory_space<vmem>>, vector<8x128xf32>,
    return
  }
  func.func @transform_0(%arg0: i32) -> (i32, i32) {
    %c0_i32 = arith.constant 0 : i32
    %c0_i32_0 = arith.constant 0 : i32
    return %arg0, %c0_i32 : i32, i32
  }
  func.func @transform_1(%arg0: i32) -> (i32, i32) {
    %c0_i32 = arith.constant 0 : i32
    %c0_i32_0 = arith.constant 0 : i32
    %c0_i32_1 = arith.constant 0 : i32
    return %c0_i32, %c0_i32_0 : i32, i32
  }
  func.func @transform_2(%arg0: i32) -> (i32, i32) {
    %c0_i32 = arith.constant 0 : i32
    %c0_i32_0 = arith.constant 0 : i32
    %c0_i32_1 = arith.constant 0 : i32
    return %c0_i32, %c0_i32_0 : i32, i32
  }
  func.func @transform_3(%arg0: i32) -> (i32, i32) {
    %c0_i32 = arith.constant 0 : i32
    %c0_i32_0 = arith.constant 0 : i32
    return %arg0, %c0_i32 : i32, i32
  }
  func.func @transform_4(%arg0: i32) -> (i32, i32) {
    %c0_i32 = arith.constant 0 : i32
    %c0_i32_0 = arith.constant 0 : i32
    %c0_i32_1 = arith.constant 0 : i32
    return %c0_i32, %c0_i32_0 : i32, i32
  }
  func.func @transform_5(%arg0: i32) -> (i32, i32) {
    %c0_i32 = arith.constant 0 : i32
    %c0_i32_0 = arith.constant 0 : i32
    %c0_i32_1 = arith.constant 0 : i32
    return %c0_i32, %c0_i32_0 : i32, i32
  }
}

</mosaic_0001>

<llo_original>
// kernel: demucs_encoder.7
$region0: #{demucs_encoder.7}
  #allocation0 [shape = 'u32[]', space=smem, size = 0x4, offset = 0x4, fixed_abs, tag = 'smem constant byte address 0x4 - core index']
  #allocation1 [shape = 'u32[72,128]{1,0:T(1,128)}', space=vmem, size = 0x9000, scoped, tag = 'internal scratch']
  %s0 = inlined_call_operand.vmem [shape: f32[48,128], index: 0, kind: input, shape index: {}, may-alias: {0,3}]
  %s1 = inlined_call_operand.vmem [shape: f32[1,128], index: 1, kind: input, shape index: {}]
  %s2 = inlined_call_operand.vmem [shape: f32[1,128], index: 2, kind: input, shape index: {}]
  %s3 = inlined_call_operand.vmem [shape: f32[48,128], index: 3, kind: output, shape index: {}, may-alias: {0,3}]
  %s4 = sld [smem:[#allocation0]]
  $region45: #{demucs_encoder.7} parent=0
    _
  %s6 = ssub.s32 1, %s4
  %s7 = scalar_select 0, %s6, %s4
  loop: start=0, step=1, limit=5
  $region2: #{demucs_encoder.7} parent=0 // loop_pre_header
    _
  $region3: #{demucs_encoder.7} parent=0 // loop_header
    %s9 = sphi 0, %s13
    %p10 = scmp.ge.s32.totalorder %s9, 5
    %s19 = sphi 0, %s21
    %s22 = sphi 0, %s19
    %s23 = sphi 0, %s22
    %s39 = sphi 0, %s23
    %s43 = sphi 0, %s43
    %s45 = sphi 0, %s43
    %s46 = sphi 0, %s45
    %s60 = sphi 0, %s46
    %s64 = sphi 0, %s64
    %s66 = sphi 0, %s64
    %s67 = sphi 0, %s66
    %s81 = sphi 0, %s67
    %s87 = sphi 0, %s89
    %s90 = sphi 0, %s87
    %s91 = sphi 0, %s90
    %s107 = sphi 0, %s91
  $region4: #{demucs_encoder.7} parent=0 // loop_header_branch
    %12 = sbr.rel (%p10) target = $region8
  $region5: #{demucs_encoder.7} parent=0 // loop_body
    %s14 = ssub.s32 %s9, 1
    %s15 = ssub.s32 %s9, 2
    %s16 = sadd.s32 %s9, 1
    %s17 = ssub.s32 %s9, %s16
    %p18 = scmp.eq.s32.totalorder %s17, 0
    %s20 = sadd.s32 %s19, 1
    %s21 = scalar_select %p18, %s19, %s20
    %p24 = pneg %p18
    %p25 = scmp.eq.s32.totalorder %s9, 2
    %p26 = por %p24, %p25
    %p27 = scmp.ne.s32.totalorder %s19, %s22
    %p28 = scmp.eq.s32.totalorder %s9, 0
    %p29 = por %p27, %p28
    %p30 = scmp.ne.s32.totalorder %s19, %s22
    %p31 = scmp.eq.s32.totalorder %s14, 2
    %p32 = por %p30, %p31
    %p33 = scmp.ne.s32.totalorder %s22, %s23
    %p34 = scmp.eq.s32.totalorder %s14, 0
    %p35 = por %p33, %p34
    %p36 = scmp.ne.s32.totalorder %s22, %s23
    %p37 = scmp.eq.s32.totalorder %s15, 2
    %p38 = por %p36, %p37
    %p40 = scmp.ne.s32.totalorder %s23, %s39
    %p41 = scmp.eq.s32.totalorder %s15, 0
    %p42 = por %p40, %p41
    %s44 = sadd.s32 %s43, 1
    %p47 = scmp.eq.s32.totalorder %s9, 2
    %p48 = scmp.ne.s32.totalorder %s43, %s45
    %p49 = scmp.eq.s32.totalorder %s9, 0
    %p50 = por %p48, %p49
    %p51 = scmp.ne.s32.totalorder %s43, %s45
    %p52 = scmp.eq.s32.totalorder %s14, 2
    %p53 = por %p51, %p52
    %p54 = scmp.ne.s32.totalorder %s45, %s46
    %p55 = scmp.eq.s32.totalorder %s14, 0
    %p56 = por %p54, %p55
    %p57 = scmp.ne.s32.totalorder %s45, %s46
    %p58 = scmp.eq.s32.totalorder %s15, 2
    %p59 = por %p57, %p58
    %p61 = scmp.ne.s32.totalorder %s46, %s60
    %p62 = scmp.eq.s32.totalorder %s15, 0
    %p63 = por %p61, %p62
    %s65 = sadd.s32 %s64, 1
    %p68 = scmp.eq.s32.totalorder %s9, 2
    %p69 = scmp.ne.s32.totalorder %s64, %s66
    %p70 = scmp.eq.s32.totalorder %s9, 0
    %p71 = por %p69, %p70
    %p72 = scmp.ne.s32.totalorder %s64, %s66
    %p73 = scmp.eq.s32.totalorder %s14, 2
    %p74 = por %p72, %p73
    %p75 = scmp.ne.s32.totalorder %s66, %s67
    %p76 = scmp.eq.s32.totalorder %s14, 0
    %p77 = por %p75, %p76
    %p78 = scmp.ne.s32.totalorder %s66, %s67
    %p79 = scmp.eq.s32.totalorder %s15, 2
    %p80 = por %p78, %p79
    %p82 = scmp.ne.s32.totalorder %s67, %s81
    %p83 = scmp.eq.s32.totalorder %s15, 0
    %p84 = por %p82, %p83
    %s85 = ssub.s32 %s9, %s16
    %p86 = scmp.eq.s32.totalorder %s85, 0
    %s88 = sadd.s32 %s87, 1
    %s89 = scalar_select %p86, %s87, %s88
    %p92 = pneg %p86
    %p93 = scmp.eq.s32.totalorder %s9, 2
    %p94 = por %p92, %p93
    %p95 = scmp.ne.s32.totalorder %s87, %s90
    %p96 = scmp.eq.s32.totalorder %s9, 0
    %p97 = por %p95, %p96
    %p98 = scmp.ne.s32.totalorder %s87, %s90
    %p99 = scmp.eq.s32.totalorder %s14, 2
    %p100 = por %p98, %p99
    %p101 = scmp.ne.s32.totalorder %s90, %s91
    %p102 = scmp.eq.s32.totalorder %s14, 0
    %p103 = por %p101, %p102
    %p104 = scmp.ne.s32.totalorder %s90, %s91
    %p105 = scmp.eq.s32.totalorder %s15, 2
    %p106 = por %p104, %p105
    %p108 = scmp.ne.s32.totalorder %s91, %s107
    %p109 = scmp.eq.s32.totalorder %s15, 0
    %p110 = por %p108, %p109
    %p111 = scmp.le.s32.totalorder 1, %s9
    %p112 = scmp.lt.s32.totalorder %s9, 4
    %p113 = pnand %p111, %p112
    %p114 = pneg %p113
    // Predicated region
    $region9: #{demucs_encoder.7} parent=5 // pred_check
      _
    $region10: #{demucs_encoder.7} parent=5 // pred_check_branch
      %116 = sbr.rel (%p113) target = $region12
    $region11: #{demucs_encoder.7} parent=5 // pred_region
      %s117 = ssub.s32 %s9, 1
      // Predicated region
      $region13: #{demucs_encoder.7} parent=11 // pred_check
        %p118 = pneg %p56
      $region14: #{demucs_encoder.7} parent=11 // pred_check_branch
        %120 = sbr.rel (%p118) target = $region16
      $region15: #{demucs_encoder.7} parent=11 // pred_region
        _
      $region16: #{demucs_encoder.7} parent=11 // pred_fallthru
        _
      // Predicated region
      $region17: #{demucs_encoder.7} parent=11 // pred_check
        %p121 = pneg %p77
      $region18: #{demucs_encoder.7} parent=11 // pred_check_branch
        %123 = sbr.rel (%p121) target = $region20
      $region19: #{demucs_encoder.7} parent=11 // pred_region
        _
      $region20: #{demucs_encoder.7} parent=11 // pred_fallthru
        _
    $region12: #{demucs_encoder.7} parent=5 // pred_fallthru
      _
    %p124 = scmp.lt.s32.totalorder %s9, 3
    // Predicated region
    $region21: #{demucs_encoder.7} parent=5 // pred_check
      %p125 = pneg %p124
    $region22: #{demucs_encoder.7} parent=5 // pred_check_branch
      %127 = sbr.rel (%p125) target = $region24
    $region23: #{demucs_encoder.7} parent=5 // pred_region
      // Predicated region
      $region25: #{demucs_encoder.7} parent=23 // pred_check
        %p128 = pneg %p29
      $region26: #{demucs_encoder.7} parent=23 // pred_check_branch
        %130 = sbr.rel (%p128) target = $region28
      $region27: #{demucs_encoder.7} parent=23 // pred_region
        %s131 = smul.u32 2, %s9
        %p132 = scmp.lt.s32.totalorder %s131, 5
        %s133 = scalar_select %p132, %s131, 5
        %s134 = smul.addr %s133, 8
        %s135 = scalar_lea.vmem %s0, %s134
        %s136 = smul.u32 2, %s9
      $region28: #{demucs_encoder.7} parent=23 // pred_fallthru
        _
    $region24: #{demucs_encoder.7} parent=5 // pred_fallthru
      _
    %p137 = scmp.le.s32.totalorder 1, %s9
    %p138 = scmp.lt.s32.totalorder %s9, 4
    %p139 = pnand %p137, %p138
    %p140 = pneg %p139
    // Predicated region
    $region29: #{demucs_encoder.7} parent=5 // pred_check
      _
    $region30: #{demucs_encoder.7} parent=5 // pred_check_branch
      %142 = sbr.rel (%p139) target = $region32
    $region31: #{demucs_encoder.7} parent=5 // pred_region
      %s143 = ssub.s32 %s9, 1
      %s144 = smul.u32 2, %s14
      %p145 = scmp.lt.s32.totalorder %s144, 5
      %s146 = scalar_select %p145, %s144, 5
      %s147 = smul.addr %s146, 8
      %s148 = scalar_lea.vmem %s0, %s147
      %p149 = pneg %p35
      %p150 = pneg %p32
      %p151 = pneg %p56
      %p152 = pneg %p53
      %p153 = pneg %p77
      %p154 = pneg %p74
      %p155 = pneg %p103
      %p156 = pneg %p100
      %s157 = smul.u32 2, %s14
      %p158 = scmp.lt.s32.totalorder %s157, 5
      %s159 = scalar_select %p158, %s157, 5
      %s160 = smul.addr %s159, 8
      %s161 = scalar_lea.vmem %s3, %s160
      %s162 = smul.u32 2, %s14
      %p163 = scmp.lt.s32.totalorder %s162, 5
      %s164 = scalar_select %p163, %s162, 5
      %s165 = smul.addr %s164, 8
      %s166 = scalar_lea.vmem %s0, %s165
      %s167 = smul.u32 2, %s14
      %s168 = smul.u32 2, %s14
      %p169 = scmp.lt.s32.totalorder %s168, 5
      %s170 = scalar_select %p169, %s168, 5
      %s171 = smul.addr %s170, 8
      %s172 = scalar_lea.vmem %s3, %s171
      %s173 = smul.u32 2, %s14
      %v174 = vld [vmem:[%s166] sm:$0xff]
      %v175 = vld [vmem:[%s166 + $0x8] sm:$0xff]
      %v176 = vld [vmem:[%s1] sm:$0x1]
      %v178 = vperm.slane %v176, 0
      %v180 = vmul.f32 %v174, %v178
      %v181 = vmul.f32 %v175, %v178
      %v182 = vld [vmem:[%s2] sm:$0x1]
      %v184 = vperm.slane %v182, 0
      %v186 = vadd.f32 %v180, %v184
      %v187 = vadd.f32 %v181, %v184
      %188 = vst [vmem:[%s172] sm:$0xff] %v186
      %189 = vst [vmem:[%s172 + $0x8] sm:$0xff] %v187
      %s190 = smul.u32 2, %s14
      %p191 = scmp.lt.s32.totalorder %s190, 5
      %s192 = scalar_select %p191, %s190, 5
      %s193 = smul.addr %s192, 8
      %s194 = scalar_lea.vmem %s3, %s193
      // Predicated region
      $region33: #{demucs_encoder.7} parent=31 // pred_check
        %p195 = pneg %p100
      $region34: #{demucs_encoder.7} parent=31 // pred_check_branch
        %197 = sbr.rel (%p195) target = $region36
      $region35: #{demucs_encoder.7} parent=31 // pred_region
        %s198 = smul.u32 2, %s14
      $region36: #{demucs_encoder.7} parent=31 // pred_fallthru
        _
    $region32: #{demucs_encoder.7} parent=5 // pred_fallthru
      _
    %p199 = scmp.le.s32.totalorder 2, %s9
    // Predicated region
    $region37: #{demucs_encoder.7} parent=5 // pred_check
      %p200 = pneg %p199
    $region38: #{demucs_encoder.7} parent=5 // pred_check_branch
      %202 = sbr.rel (%p200) target = $region40
    $region39: #{demucs_encoder.7} parent=5 // pred_region
      %s203 = ssub.s32 %s9, 2
      // Predicated region
      $region41: #{demucs_encoder.7} parent=39 // pred_check
        %p204 = pneg %p106
      $region42: #{demucs_encoder.7} parent=39 // pred_check_branch
        %206 = sbr.rel (%p204) target = $region44
      $region43: #{demucs_encoder.7} parent=39 // pred_region
        %s207 = smul.u32 2, %s15
        %p208 = scmp.lt.s32.totalorder %s207, 5
        %s209 = scalar_select %p208, %s207, 5
        %s210 = smul.addr %s209, 8
        %s211 = scalar_lea.vmem %s3, %s210
      $region44: #{demucs_encoder.7} parent=39 // pred_fallthru
        _
    $region40: #{demucs_encoder.7} parent=5 // pred_fallthru
      _
  $region6: #{demucs_encoder.7} parent=0 // loop_footer
    %s13 = sadd.s32 1, %s9
  $region7: #{demucs_encoder.7} parent=0 // loop_footer_branch
    %8 = sbr.rel target = $region3
  $region8: #{demucs_encoder.7} parent=0 // loop_exit
    _

// kernel: demucs_encoder.6
$region0: #{demucs_encoder.6}
  #allocation0 [shape = 'u32[]', space=smem, size = 0x4, offset = 0x4, fixed_abs, tag = 'smem constant byte address 0x4 - core index']
  #allocation1 [shape = 'u32[72,128]{1,0:T(1,128)}', space=vmem, size = 0x9000, scoped, tag = 'internal scratch']
  %s0 = inlined_call_operand.vmem [shape: bf16[48,128], index: 0, kind: input, shape index: {}]
  %s1 = inlined_call_operand.vmem [shape: bf16[128,128], index: 1, kind: input, shape index: {}]
  %s2 = inlined_call_operand.vmem [shape: f32[1,128], index: 2, kind: input, shape index: {}]
  %s3 = inlined_call_operand.vmem [shape: f32[48,128], index: 3, kind: output, shape index: {0}]
  %s4 = inlined_call_operand.vmem [shape: f32[1,128], index: 4, kind: output, shape index: {1}]
  %s5 = inlined_call_operand.vmem [shape: f32[1,128], index: 5, kind: output, shape index: {2}]
  %6 = xla_tuple %s3, %s4, %s5
  %s7 = sld [smem:[#allocation0]]
  $region65: #{demucs_encoder.6} parent=0
    _
  %s9 = ssub.s32 1, %s7
  %s10 = scalar_select 0, %s9, %s7
  loop: start=0, step=1, limit=5
  $region2: #{demucs_encoder.6} parent=0 // loop_pre_header
    _
  $region3: #{demucs_encoder.6} parent=0 // loop_header
    %s12 = sphi 0, %s16
    %p13 = scmp.ge.s32.totalorder %s12, 5
    %s22 = sphi 0, %s24
    %s25 = sphi 0, %s22
    %s26 = sphi 0, %s25
    %s42 = sphi 0, %s26
    %s46 = sphi 0, %s46
    %s48 = sphi 0, %s46
    %s49 = sphi 0, %s48
    %s63 = sphi 0, %s49
    %s67 = sphi 0, %s67
    %s69 = sphi 0, %s67
    %s70 = sphi 0, %s69
    %s84 = sphi 0, %s70
    %s90 = sphi 0, %s92
    %s93 = sphi 0, %s90
    %s94 = sphi 0, %s93
    %s110 = sphi 0, %s94
    %s114 = sphi 0, %s114
    %s116 = sphi 0, %s114
    %s117 = sphi 0, %s116
    %s131 = sphi 0, %s117
    %s135 = sphi 0, %s135
    %s137 = sphi 0, %s135
    %s138 = sphi 0, %s137
    %s152 = sphi 0, %s138
  $region4: #{demucs_encoder.6} parent=0 // loop_header_branch
    %15 = sbr.rel (%p13) target = $region8
  $region5: #{demucs_encoder.6} parent=0 // loop_body
    %s17 = ssub.s32 %s12, 1
    %s18 = ssub.s32 %s12, 2
    %s19 = sadd.s32 %s12, 1
    %s20 = ssub.s32 %s12, %s19
    %p21 = scmp.eq.s32.totalorder %s20, 0
    %s23 = sadd.s32 %s22, 1
    %s24 = scalar_select %p21, %s22, %s23
    %p27 = pneg %p21
    %p28 = scmp.eq.s32.totalorder %s12, 2
    %p29 = por %p27, %p28
    %p30 = scmp.ne.s32.totalorder %s22, %s25
    %p31 = scmp.eq.s32.totalorder %s12, 0
    %p32 = por %p30, %p31
    %p33 = scmp.ne.s32.totalorder %s22, %s25
    %p34 = scmp.eq.s32.totalorder %s17, 2
    %p35 = por %p33, %p34
    %p36 = scmp.ne.s32.totalorder %s25, %s26
    %p37 = scmp.eq.s32.totalorder %s17, 0
    %p38 = por %p36, %p37
    %p39 = scmp.ne.s32.totalorder %s25, %s26
    %p40 = scmp.eq.s32.totalorder %s18, 2
    %p41 = por %p39, %p40
    %p43 = scmp.ne.s32.totalorder %s26, %s42
    %p44 = scmp.eq.s32.totalorder %s18, 0
    %p45 = por %p43, %p44
    %s47 = sadd.s32 %s46, 1
    %p50 = scmp.eq.s32.totalorder %s12, 2
    %p51 = scmp.ne.s32.totalorder %s46, %s48
    %p52 = scmp.eq.s32.totalorder %s12, 0
    %p53 = por %p51, %p52
    %p54 = scmp.ne.s32.totalorder %s46, %s48
    %p55 = scmp.eq.s32.totalorder %s17, 2
    %p56 = por %p54, %p55
    %p57 = scmp.ne.s32.totalorder %s48, %s49
    %p58 = scmp.eq.s32.totalorder %s17, 0
    %p59 = por %p57, %p58
    %p60 = scmp.ne.s32.totalorder %s48, %s49
    %p61 = scmp.eq.s32.totalorder %s18, 2
    %p62 = por %p60, %p61
    %p64 = scmp.ne.s32.totalorder %s49, %s63
    %p65 = scmp.eq.s32.totalorder %s18, 0
    %p66 = por %p64, %p65
    %s68 = sadd.s32 %s67, 1
    %p71 = scmp.eq.s32.totalorder %s12, 2
    %p72 = scmp.ne.s32.totalorder %s67, %s69
    %p73 = scmp.eq.s32.totalorder %s12, 0
    %p74 = por %p72, %p73
    %p75 = scmp.ne.s32.totalorder %s67, %s69
    %p76 = scmp.eq.s32.totalorder %s17, 2
    %p77 = por %p75, %p76
    %p78 = scmp.ne.s32.totalorder %s69, %s70
    %p79 = scmp.eq.s32.totalorder %s17, 0
    %p80 = por %p78, %p79
    %p81 = scmp.ne.s32.totalorder %s69, %s70
    %p82 = scmp.eq.s32.totalorder %s18, 2
    %p83 = por %p81, %p82
    %p85 = scmp.ne.s32.totalorder %s70, %s84
    %p86 = scmp.eq.s32.totalorder %s18, 0
    %p87 = por %p85, %p86
    %s88 = ssub.s32 %s12, %s19
    %p89 = scmp.eq.s32.totalorder %s88, 0
    %s91 = sadd.s32 %s90, 1
    %s92 = scalar_select %p89, %s90, %s91
    %p95 = pneg %p89
    %p96 = scmp.eq.s32.totalorder %s12, 2
    %p97 = por %p95, %p96
    %p98 = scmp.ne.s32.totalorder %s90, %s93
    %p99 = scmp.eq.s32.totalorder %s12, 0
    %p100 = por %p98, %p99
    %p101 = scmp.ne.s32.totalorder %s90, %s93
    %p102 = scmp.eq.s32.totalorder %s17, 2
    %p103 = por %p101, %p102
    %p104 = scmp.ne.s32.totalorder %s93, %s94
    %p105 = scmp.eq.s32.totalorder %s17, 0
    %p106 = por %p104, %p105
    %p107 = scmp.ne.s32.totalorder %s93, %s94
    %p108 = scmp.eq.s32.totalorder %s18, 2
    %p109 = por %p107, %p108
    %p111 = scmp.ne.s32.totalorder %s94, %s110
    %p112 = scmp.eq.s32.totalorder %s18, 0
    %p113 = por %p111, %p112
    %s115 = sadd.s32 %s114, 1
    %p118 = scmp.eq.s32.totalorder %s12, 2
    %p119 = scmp.ne.s32.totalorder %s114, %s116
    %p120 = scmp.eq.s32.totalorder %s12, 0
    %p121 = por %p119, %p120
    %p122 = scmp.ne.s32.totalorder %s114, %s116
    %p123 = scmp.eq.s32.totalorder %s17, 2
    %p124 = por %p122, %p123
    %p125 = scmp.ne.s32.totalorder %s116, %s117
    %p126 = scmp.eq.s32.totalorder %s17, 0
    %p127 = por %p125, %p126
    %p128 = scmp.ne.s32.totalorder %s116, %s117
    %p129 = scmp.eq.s32.totalorder %s18, 2
    %p130 = por %p128, %p129
    %p132 = scmp.ne.s32.totalorder %s117, %s131
    %p133 = scmp.eq.s32.totalorder %s18, 0
    %p134 = por %p132, %p133
    %s136 = sadd.s32 %s135, 1
    %p139 = scmp.eq.s32.totalorder %s12, 2
    %p140 = scmp.ne.s32.totalorder %s135, %s137
    %p141 = scmp.eq.s32.totalorder %s12, 0
    %p142 = por %p140, %p141
    %p143 = scmp.ne.s32.totalorder %s135, %s137
    %p144 = scmp.eq.s32.totalorder %s17, 2
    %p145 = por %p143, %p144
    %p146 = scmp.ne.s32.totalorder %s137, %s138
    %p147 = scmp.eq.s32.totalorder %s17, 0
    %p148 = por %p146, %p147
    %p149 = scmp.ne.s32.totalorder %s137, %s138
    %p150 = scmp.eq.s32.totalorder %s18, 2
    %p151 = por %p149, %p150
    %p153 = scmp.ne.s32.totalorder %s138, %s152
    %p154 = scmp.eq.s32.totalorder %s18, 0
    %p155 = por %p153, %p154
    %p156 = scmp.le.s32.totalorder 1, %s12
    %p157 = scmp.lt.s32.totalorder %s12, 4
    %p158 = pnand %p156, %p157
    %p159 = pneg %p158
    // Predicated region
    $region9: #{demucs_encoder.6} parent=5 // pred_check
      _
    $region10: #{demucs_encoder.6} parent=5 // pred_check_branch
      %161 = sbr.rel (%p158) target = $region12
    $region11: #{demucs_encoder.6} parent=5 // pred_region
      %s162 = ssub.s32 %s12, 1
      // Predicated region
      $region13: #{demucs_encoder.6} parent=11 // pred_check
        %p163 = pneg %p59
      $region14: #{demucs_encoder.6} parent=11 // pred_check_branch
        %165 = sbr.rel (%p163) target = $region16
      $region15: #{demucs_encoder.6} parent=11 // pred_region
        _
      $region16: #{demucs_encoder.6} parent=11 // pred_fallthru
        _
      // Predicated region
      $region17: #{demucs_encoder.6} parent=11 // pred_check
        %p166 = pneg %p80
      $region18: #{demucs_encoder.6} parent=11 // pred_check_branch
        %168 = sbr.rel (%p166) target = $region20
      $region19: #{demucs_encoder.6} parent=11 // pred_region
        _
      $region20: #{demucs_encoder.6} parent=11 // pred_fallthru
        _
    $region12: #{demucs_encoder.6} parent=5 // pred_fallthru
      _
    %p169 = scmp.lt.s32.totalorder %s12, 3
    // Predicated region
    $region21: #{demucs_encoder.6} parent=5 // pred_check
      %p170 = pneg %p169
    $region22: #{demucs_encoder.6} parent=5 // pred_check_branch
      %172 = sbr.rel (%p170) target = $region24
    $region23: #{demucs_encoder.6} parent=5 // pred_region
      // Predicated region
      $region25: #{demucs_encoder.6} parent=23 // pred_check
        %p173 = pneg %p32
      $region26: #{demucs_encoder.6} parent=23 // pred_check_branch
        %175 = sbr.rel (%p173) target = $region28
      $region27: #{demucs_encoder.6} parent=23 // pred_region
        %s176 = smul.u32 2, %s12
        %p177 = scmp.lt.s32.totalorder %s176, 5
        %s178 = scalar_select %p177, %s176, 5
        %s179 = smul.addr %s178, 4
        %s180 = scalar_lea.vmem %s0, %s179
        %s181 = smul.u32 2, %s12
      $region28: #{demucs_encoder.6} parent=23 // pred_fallthru
        _
    $region24: #{demucs_encoder.6} parent=5 // pred_fallthru
      _
    %p182 = scmp.le.s32.totalorder 1, %s12
    %p183 = scmp.lt.s32.totalorder %s12, 4
    %p184 = pnand %p182, %p183
    %p185 = pneg %p184
    // Predicated region
    $region29: #{demucs_encoder.6} parent=5 // pred_check
      _
    $region30: #{demucs_encoder.6} parent=5 // pred_check_branch
      %187 = sbr.rel (%p184) target = $region32
    $region31: #{demucs_encoder.6} parent=5 // pred_region
      %s188 = ssub.s32 %s12, 1
      %s189 = smul.u32 2, %s17
      %p190 = scmp.lt.s32.totalorder %s189, 5
      %s191 = scalar_select %p190, %s189, 5
      %s192 = smul.addr %s191, 4
      %s193 = scalar_lea.vmem %s0, %s192
      %p194 = pneg %p38
      %p195 = pneg %p35
      %p196 = pneg %p59
      %p197 = pneg %p56
      %p198 = pneg %p80
      %p199 = pneg %p77
      %p200 = pneg %p106
      %p201 = pneg %p103
      %s202 = smul.u32 2, %s17
      %p203 = scmp.lt.s32.totalorder %s202, 5
      %s204 = scalar_select %p203, %s202, 5
      %s205 = smul.addr %s204, 8
      %s206 = scalar_lea.vmem %s3, %s205
      %p207 = pneg %p127
      %p208 = pneg %p124
      %p209 = pneg %p148
      %p210 = pneg %p145
      %s211 = smul.u32 2, %s17
      %p212 = scmp.lt.s32.totalorder %s211, 5
      %s213 = scalar_select %p212, %s211, 5
      %s214 = smul.addr %s213, 4
      %s215 = scalar_lea.vmem %s0, %s214
      %s216 = smul.u32 2, %s17
      %s217 = smul.u32 2, %s17
      %p218 = scmp.lt.s32.totalorder %s217, 5
      %s219 = scalar_select %p218, %s217, 5
      %s220 = smul.addr %s219, 8
      %s221 = scalar_lea.vmem %s3, %s220
      %s222 = smul.u32 2, %s17
      %v223 = vld [vmem:[%s215] sm:$0xf]
      %v224 = vld [vmem:[%s215 + $0x4] sm:$0xf]
      %v225 = vld [vmem:[%s1] sm:$0xf]
      %v226 = vld [vmem:[%s1 + $0x4] sm:$0xf]
      %v227 = vld [vmem:[%s1 + $0x8] sm:$0xf]
      %v228 = vld [vmem:[%s1 + $0xc] sm:$0xf]
      %v229 = vld [vmem:[%s1 + $0x10] sm:$0xf]
      %v230 = vld [vmem:[%s1 + $0x14] sm:$0xf]
      %v231 = vld [vmem:[%s1 + $0x18] sm:$0xf]
      %v232 = vld [vmem:[%s1 + $0x1c] sm:$0xf]
      %v233 = vld [vmem:[%s1 + $0x20] sm:$0xf]
      %v234 = vld [vmem:[%s1 + $0x24] sm:$0xf]
      %v235 = vld [vmem:[%s1 + $0x28] sm:$0xf]
      %v236 = vld [vmem:[%s1 + $0x2c] sm:$0xf]
      %v237 = vld [vmem:[%s1 + $0x30] sm:$0xf]
      %v238 = vld [vmem:[%s1 + $0x34] sm:$0xf]
      %v239 = vld [vmem:[%s1 + $0x38] sm:$0xf]
      %v240 = vld [vmem:[%s1 + $0x3c] sm:$0xf]
      %v241 = vld [vmem:[%s2] sm:$0x1]
      %v243 = vperm.slane %v241, 0
      %v247 = vunpack.c.l.b16 %v223
      %v248 = vunpack.c.l.b16 %v224
      %v249 = vpack.c.b16 %v248, %v247
      %v267 = vunpack.c.l.b16 %v225
      %v268 = vunpack.c.l.b16 %v226
      %v269 = vunpack.c.l.b16 %v227
      %v270 = vunpack.c.l.b16 %v228
      %v271 = vunpack.c.l.b16 %v229
      %v272 = vunpack.c.l.b16 %v230
      %v273 = vunpack.c.l.b16 %v231
      %v274 = vunpack.c.l.b16 %v232
      %v275 = vunpack.c.l.b16 %v233
      %v276 = vunpack.c.l.b16 %v234
      %v277 = vunpack.c.l.b16 %v235
      %v278 = vunpack.c.l.b16 %v236
      %v279 = vunpack.c.l.b16 %v237
      %v280 = vunpack.c.l.b16 %v238
      %v281 = vunpack.c.l.b16 %v239
      %v282 = vunpack.c.l.b16 %v240
      %v283 = vpack.c.b16 %v268, %v267
      %v284 = vpack.c.b16 %v270, %v269
      %v285 = vpack.c.b16 %v272, %v271
      %v286 = vpack.c.b16 %v274, %v273
      %v287 = vpack.c.b16 %v276, %v275
      %v288 = vpack.c.b16 %v278, %v277
      %v289 = vpack.c.b16 %v280, %v279
      %v290 = vpack.c.b16 %v282, %v281
      %299 = vmatpush.bf16.msra.mxu0 %v290
      %300 = vmatpush.bf16.msra.mxu0 %v289
      %301 = vmatpush.bf16.msra.mxu0 %v288
      %302 = vmatpush.bf16.msra.mxu0 %v287
      %303 = vmatpush.bf16.msra.mxu0 %v286
      %304 = vmatpush.bf16.msra.mxu0 %v285
      %305 = vmatpush.bf16.msra.mxu0 %v284
      %306 = vmatpush.bf16.msra.mxu0 %v283
      %307 = vmatmul.bf16.gmra.mxu0 %v249
      %v308 = vpop.f32.mrf.mxu0
      %v309 = vadd.f32 %v243, %v308
      %v310 = vpop.f32.mrf.mxu0
      %v311 = vadd.f32 %v243, %v310
      %312 = vdwg.mxu0
      %v313 = vmax.f32 %v309, 0.0
      %v314 = vmax.f32 %v311, 0.0
      %s315 = smul.u32 %s17, 16
      %v316 = vlaneseq
      %v317 = vshrl.u32 %v316, 7
      %v318 = vadd.s32 %v317, 8
      %v319 = vstv %s315
      %v320 = vadd.s32 %v319, %v317
      %v321 = vadd.s32 %v319, %v318
      %vm322 = vcmp.lt.s32.totalorder %v320, 34
      %vm323 = vcmp.lt.s32.totalorder %v321, 34
      %v324 = vsel %vm322, 1, 0
      %v325 = vsel %vm323, 1, 0
      %vm326 = vcmp.eq.s32.totalorder %v324, 1
      %vm327 = vcmp.eq.s32.totalorder %v325, 1
      %v328 = vsel %vm326, %v313, 0.0
      %v329 = vsel %vm327, %v314, 0.0
      %p330 = scmp.eq.s32.totalorder %s17, 0
      // Predicated region
      $region33: #{demucs_encoder.6} parent=31 // pred_check
        %p331 = pneg %p330
      $region34: #{demucs_encoder.6} parent=31 // pred_check_branch
        %333 = sbr.rel (%p331) target = $region36
      $region35: #{demucs_encoder.6} parent=31 // pred_region
        %334 = vst [vmem:[%s4] sm:$0x1] 0.0
        %335 = vst [vmem:[%s5] sm:$0x1] 0.0
      $region36: #{demucs_encoder.6} parent=31 // pred_fallthru
        _
      %v336 = vld [vmem:[%s4] sm:$0x1]
      %v337 = vadd.f32 %v328, %v329
      %v338 = vrot.slane %v337, 4
      %v339 = vadd.f32 %v337, %v338
      %v340 = vrot.slane %v339, 2
      %v341 = vadd.f32 %v339, %v340
      %v342 = vrot.slane %v341, 1
      %v343 = vadd.f32 %v341, %v342
      %v344 = vadd.f32 %v336, %v343
      %345 = vst [vmem:[%s4] sm:$0x1] %v344
      %v346 = vld [vmem:[%s5] sm:$0x1]
      %v347 = vmul.f32 %v328, %v328
      %v348 = vmul.f32 %v329, %v329
      %v349 = vadd.f32 %v347, %v348
      %v350 = vrot.slane %v349, 4
      %v351 = vadd.f32 %v349, %v350
      %v352 = vrot.slane %v351, 2
      %v353 = vadd.f32 %v351, %v352
      %v354 = vrot.slane %v353, 1
      %v355 = vadd.f32 %v353, %v354
      %v356 = vadd.f32 %v346, %v355
      %357 = vst [vmem:[%s5] sm:$0x1] %v356
      %358 = vst [vmem:[%s221] sm:$0xff] %v313
      %359 = vst [vmem:[%s221 + $0x8] sm:$0xff] %v314
      %s360 = smul.u32 2, %s17
      %p361 = scmp.lt.s32.totalorder %s360, 5
      %s362 = scalar_select %p361, %s360, 5
      %s363 = smul.addr %s362, 8
      %s364 = scalar_lea.vmem %s3, %s363
      // Predicated region
      $region37: #{demucs_encoder.6} parent=31 // pred_check
        %p365 = pneg %p103
      $region38: #{demucs_encoder.6} parent=31 // pred_check_branch
        %367 = sbr.rel (%p365) target = $region40
      $region39: #{demucs_encoder.6} parent=31 // pred_region
        %s368 = smul.u32 2, %s17
      $region40: #{demucs_encoder.6} parent=31 // pred_fallthru
        _
      // Predicated region
      $region41: #{demucs_encoder.6} parent=31 // pred_check
        %p369 = pneg %p124
      $region42: #{demucs_encoder.6} parent=31 // pred_check_branch
        %371 = sbr.rel (%p369) target = $region44
      $region43: #{demucs_encoder.6} parent=31 // pred_region
        _
      $region44: #{demucs_encoder.6} parent=31 // pred_fallthru
        _
      // Predicated region
      $region45: #{demucs_encoder.6} parent=31 // pred_check
        %p372 = pneg %p145
      $region46: #{demucs_encoder.6} parent=31 // pred_check_branch
        %374 = sbr.rel (%p372) target = $region48
      $region47: #{demucs_encoder.6} parent=31 // pred_region
        _
      $region48: #{demucs_encoder.6} parent=31 // pred_fallthru
        _
      // Predicated region
      $region49: #{demucs_encoder.6} parent=31 // pred_check
        %p375 = pneg %p124
      $region50: #{demucs_encoder.6} parent=31 // pred_check_branch
        %377 = sbr.rel (%p375) target = $region52
      $region51: #{demucs_encoder.6} parent=31 // pred_region
        _
      $region52: #{demucs_encoder.6} parent=31 // pred_fallthru
        _
      // Predicated region
      $region53: #{demucs_encoder.6} parent=31 // pred_check
        %p378 = pneg %p145
      $region54: #{demucs_encoder.6} parent=31 // pred_check_branch
        %380 = sbr.rel (%p378) target = $region56
      $region55: #{demucs_encoder.6} parent=31 // pred_region
        _
      $region56: #{demucs_encoder.6} parent=31 // pred_fallthru
        _
    $region32: #{demucs_encoder.6} parent=5 // pred_fallthru
      _
    %p381 = scmp.le.s32.totalorder 2, %s12
    // Predicated region
    $region57: #{demucs_encoder.6} parent=5 // pred_check
      %p382 = pneg %p381
    $region58: #{demucs_encoder.6} parent=5 // pred_check_branch
      %384 = sbr.rel (%p382) target = $region60
    $region59: #{demucs_encoder.6} parent=5 // pred_region
      %s385 = ssub.s32 %s12, 2
      // Predicated region
      $region61: #{demucs_encoder.6} parent=59 // pred_check
        %p386 = pneg %p109
      $region62: #{demucs_encoder.6} parent=59 // pred_check_branch
        %388 = sbr.rel (%p386) target = $region64
      $region63: #{demucs_encoder.6} parent=59 // pred_region
        %s389 = smul.u32 2, %s18
        %p390 = scmp.lt.s32.totalorder %s389, 5
        %s391 = scalar_select %p390, %s389, 5
        %s392 = smul.addr %s391, 8
        %s393 = scalar_lea.vmem %s3, %s392
      $region64: #{demucs_encoder.6} parent=59 // pred_fallthru
        _
    $region60: #{demucs_encoder.6} parent=5 // pred_fallthru
      _
  $region6: #{demucs_encoder.6} parent=0 // loop_footer
    %s16 = sadd.s32 1, %s12
  $region7: #{demucs_encoder.6} parent=0 // loop_footer_branch
    %11 = sbr.rel target = $region3
  $region8: #{demucs_encoder.6} parent=0 // loop_exit
    _

// kernel: demucs_encoder.9
$region0: #{demucs_encoder.9}
  #allocation0 [shape = 'u32[]', space=smem, size = 0x4, offset = 0x4, fixed_abs, tag = 'smem constant byte address 0x4 - core index']
  #allocation1 [shape = 'u32[72,128]{1,0:T(1,128)}', space=vmem, size = 0x9000, scoped, tag = 'internal scratch']
  %s0 = inlined_call_operand.vmem [shape: f32[16,128], index: 0, kind: input, shape index: {}, may-alias: {0,3}]
  %s1 = inlined_call_operand.vmem [shape: f32[1,128], index: 1, kind: input, shape index: {}]
  %s2 = inlined_call_operand.vmem [shape: f32[1,128], index: 2, kind: input, shape index: {}]
  %s3 = inlined_call_operand.vmem [shape: f32[16,128], index: 3, kind: output, shape index: {}, may-alias: {0,3}]
  %s4 = sld [smem:[#allocation0]]
  $region22: #{demucs_encoder.9} parent=0
    _
  %s6 = ssub.s32 1, %s4
  %s7 = scalar_select 0, %s6, %s4
  // Predicated region
  $region2: #{demucs_encoder.9} parent=0 // pred_check
    _
  $region3: #{demucs_encoder.9} parent=0 // pred_check_branch
    %9 = sbr.rel (0) target = $region5
  $region4: #{demucs_encoder.9} parent=0 // pred_region
    _
  $region5: #{demucs_encoder.9} parent=0 // pred_fallthru
    _
  // Predicated region
  $region6: #{demucs_encoder.9} parent=0 // pred_check
    _
  $region7: #{demucs_encoder.9} parent=0 // pred_check_branch
    %11 = sbr.rel (0) target = $region9
  $region8: #{demucs_encoder.9} parent=0 // pred_region
    _
  $region9: #{demucs_encoder.9} parent=0 // pred_fallthru
    _
  // Predicated region
  $region10: #{demucs_encoder.9} parent=0 // pred_check
    _
  $region11: #{demucs_encoder.9} parent=0 // pred_check_branch
    %13 = sbr.rel (0) target = $region13
  $region12: #{demucs_encoder.9} parent=0 // pred_region
    _
  $region13: #{demucs_encoder.9} parent=0 // pred_fallthru
    _
  %v14 = vld [vmem:[%s0] sm:$0xff]
  %v15 = vld [vmem:[%s0 + $0x8] sm:$0xff]
  %v16 = vld [vmem:[%s1] sm:$0x1]
  %v18 = vperm.slane %v16, 0
  %v20 = vmul.f32 %v14, %v18
  %v21 = vmul.f32 %v15, %v18
  %v22 = vld [vmem:[%s2] sm:$0x1]
  %v24 = vperm.slane %v22, 0
  %v26 = vadd.f32 %v20, %v24
  %v27 = vadd.f32 %v21, %v24
  %28 = vst [vmem:[%s3] sm:$0xff] %v26
  %29 = vst [vmem:[%s3 + $0x8] sm:$0xff] %v27
  // Predicated region
  $region14: #{demucs_encoder.9} parent=0 // pred_check
    _
  $region15: #{demucs_encoder.9} parent=0 // pred_check_branch
    %31 = sbr.rel (0) target = $region17
  $region16: #{demucs_encoder.9} parent=0 // pred_region
    _
  $region17: #{demucs_encoder.9} parent=0 // pred_fallthru
    _
  // Predicated region
  $region18: #{demucs_encoder.9} parent=0 // pred_check
    _
  $region19: #{demucs_encoder.9} parent=0 // pred_check_branch
    %33 = sbr.rel (0) target = $region21
  $region20: #{demucs_encoder.9} parent=0 // pred_region
    _
  $region21: #{demucs_encoder.9} parent=0 // pred_fallthru
    _

// kernel: demucs_encoder.8
$region0: #{demucs_encoder.8}
  #allocation0 [shape = 'u32[]', space=smem, size = 0x4, offset = 0x4, fixed_abs, tag = 'smem constant byte address 0x4 - core index']
  #allocation1 [shape = 'u32[72,128]{1,0:T(1,128)}', space=vmem, size = 0x9000, scoped, tag = 'internal scratch']
  %s0 = inlined_call_operand.vmem [shape: bf16[16,128], index: 0, kind: input, shape index: {}]
  %s1 = inlined_call_operand.vmem [shape: bf16[128,128], index: 1, kind: input, shape index: {}]
  %s2 = inlined_call_operand.vmem [shape: f32[1,128], index: 2, kind: input, shape index: {}]
  %s3 = inlined_call_operand.vmem [shape: f32[16,128], index: 3, kind: output, shape index: {0}]
  %s4 = inlined_call_operand.vmem [shape: f32[1,128], index: 4, kind: output, shape index: {1}]
  %s5 = inlined_call_operand.vmem [shape: f32[1,128], index: 5, kind: output, shape index: {2}]
  %6 = xla_tuple %s3, %s4, %s5
  %s7 = sld [smem:[#allocation0]]
  $region42: #{demucs_encoder.8} parent=0
    _
  %s9 = ssub.s32 1, %s7
  %s10 = scalar_select 0, %s9, %s7
  // Predicated region
  $region2: #{demucs_encoder.8} parent=0 // pred_check
    _
  $region3: #{demucs_encoder.8} parent=0 // pred_check_branch
    %12 = sbr.rel (0) target = $region5
  $region4: #{demucs_encoder.8} parent=0 // pred_region
    _
  $region5: #{demucs_encoder.8} parent=0 // pred_fallthru
    _
  // Predicated region
  $region6: #{demucs_encoder.8} parent=0 // pred_check
    _
  $region7: #{demucs_encoder.8} parent=0 // pred_check_branch
    %14 = sbr.rel (0) target = $region9
  $region8: #{demucs_encoder.8} parent=0 // pred_region
    _
  $region9: #{demucs_encoder.8} parent=0 // pred_fallthru
    _
  // Predicated region
  $region10: #{demucs_encoder.8} parent=0 // pred_check
    _
  $region11: #{demucs_encoder.8} parent=0 // pred_check_branch
    %16 = sbr.rel (0) target = $region13
  $region12: #{demucs_encoder.8} parent=0 // pred_region
    _
  $region13: #{demucs_encoder.8} parent=0 // pred_fallthru
    _
  %v17 = vld [vmem:[%s0] sm:$0xf]
  %v18 = vld [vmem:[%s0 + $0x4] sm:$0xf]
  %v19 = vld [vmem:[%s1] sm:$0xf]
  %v20 = vld [vmem:[%s1 + $0x4] sm:$0xf]
  %v21 = vld [vmem:[%s1 + $0x8] sm:$0xf]
  %v22 = vld [vmem:[%s1 + $0xc] sm:$0xf]
  %v23 = vld [vmem:[%s1 + $0x10] sm:$0xf]
  %v24 = vld [vmem:[%s1 + $0x14] sm:$0xf]
  %v25 = vld [vmem:[%s1 + $0x18] sm:$0xf]
  %v26 = vld [vmem:[%s1 + $0x1c] sm:$0xf]
  %v27 = vld [vmem:[%s1 + $0x20] sm:$0xf]
  %v28 = vld [vmem:[%s1 + $0x24] sm:$0xf]
  %v29 = vld [vmem:[%s1 + $0x28] sm:$0xf]
  %v30 = vld [vmem:[%s1 + $0x2c] sm:$0xf]
  %v31 = vld [vmem:[%s1 + $0x30] sm:$0xf]
  %v32 = vld [vmem:[%s1 + $0x34] sm:$0xf]
  %v33 = vld [vmem:[%s1 + $0x38] sm:$0xf]
  %v34 = vld [vmem:[%s1 + $0x3c] sm:$0xf]
  %v35 = vld [vmem:[%s2] sm:$0x1]
  %v37 = vperm.slane %v35, 0
  %v41 = vunpack.c.l.b16 %v17
  %v42 = vunpack.c.l.b16 %v18
  %v43 = vpack.c.b16 %v42, %v41
  %v61 = vunpack.c.l.b16 %v19
  %v62 = vunpack.c.l.b16 %v20
  %v63 = vunpack.c.l.b16 %v21
  %v64 = vunpack.c.l.b16 %v22
  %v65 = vunpack.c.l.b16 %v23
  %v66 = vunpack.c.l.b16 %v24
  %v67 = vunpack.c.l.b16 %v25
  %v68 = vunpack.c.l.b16 %v26
  %v69 = vunpack.c.l.b16 %v27
  %v70 = vunpack.c.l.b16 %v28
  %v71 = vunpack.c.l.b16 %v29
  %v72 = vunpack.c.l.b16 %v30
  %v73 = vunpack.c.l.b16 %v31
  %v74 = vunpack.c.l.b16 %v32
  %v75 = vunpack.c.l.b16 %v33
  %v76 = vunpack.c.l.b16 %v34
  %v77 = vpack.c.b16 %v62, %v61
  %v78 = vpack.c.b16 %v64, %v63
  %v79 = vpack.c.b16 %v66, %v65
  %v80 = vpack.c.b16 %v68, %v67
  %v81 = vpack.c.b16 %v70, %v69
  %v82 = vpack.c.b16 %v72, %v71
  %v83 = vpack.c.b16 %v74, %v73
  %v84 = vpack.c.b16 %v76, %v75
  %93 = vmatpush.bf16.msra.mxu0 %v84
  %94 = vmatpush.bf16.msra.mxu0 %v83
  %95 = vmatpush.bf16.msra.mxu0 %v82
  %96 = vmatpush.bf16.msra.mxu0 %v81
  %97 = vmatpush.bf16.msra.mxu0 %v80
  %98 = vmatpush.bf16.msra.mxu0 %v79
  %99 = vmatpush.bf16.msra.mxu0 %v78
  %100 = vmatpush.bf16.msra.mxu0 %v77
  %101 = vmatmul.bf16.gmra.mxu0 %v43
  %v102 = vpop.f32.mrf.mxu0
  %v103 = vadd.f32 %v37, %v102
  %v104 = vpop.f32.mrf.mxu0
  %v105 = vadd.f32 %v37, %v104
  %106 = vdwg.mxu0
  %v107 = vmax.f32 %v103, 0.0
  %v108 = vmax.f32 %v105, 0.0
  %s109 = smul.u32 0, 16
  %v110 = vlaneseq
  %v111 = vshrl.u32 %v110, 7
  %v112 = vadd.s32 %v111, 8
  %v113 = vstv %s109
  %v114 = vadd.s32 %v113, %v111
  %v115 = vadd.s32 %v113, %v112
  %vm116 = vcmp.lt.s32.totalorder %v114, 10
  %vm117 = vcmp.lt.s32.totalorder %v115, 10
  %v118 = vsel %vm116, 1, 0
  %v119 = vsel %vm117, 1, 0
  %vm120 = vcmp.eq.s32.totalorder %v118, 1
  %vm121 = vcmp.eq.s32.totalorder %v119, 1
  %v122 = vsel %vm120, %v107, 0.0
  %v123 = vsel %vm121, %v108, 0.0
  %p124 = scmp.eq.s32.totalorder 0, 0
  // Predicated region
  $region14: #{demucs_encoder.8} parent=0 // pred_check
    %p125 = pneg %p124
  $region15: #{demucs_encoder.8} parent=0 // pred_check_branch
    %127 = sbr.rel (%p125) target = $region17
  $region16: #{demucs_encoder.8} parent=0 // pred_region
    %128 = vst [vmem:[%s4] sm:$0x1] 0.0
    %129 = vst [vmem:[%s5] sm:$0x1] 0.0
  $region17: #{demucs_encoder.8} parent=0 // pred_fallthru
    _
  %v130 = vld [vmem:[%s4] sm:$0x1]
  %v131 = vadd.f32 %v122, %v123
  %v132 = vrot.slane %v131, 4
  %v133 = vadd.f32 %v131, %v132
  %v134 = vrot.slane %v133, 2
  %v135 = vadd.f32 %v133, %v134
  %v136 = vrot.slane %v135, 1
  %v137 = vadd.f32 %v135, %v136
  %v138 = vadd.f32 %v130, %v137
  %139 = vst [vmem:[%s4] sm:$0x1] %v138
  %v140 = vld [vmem:[%s5] sm:$0x1]
  %v141 = vmul.f32 %v122, %v122
  %v142 = vmul.f32 %v123, %v123
  %v143 = vadd.f32 %v141, %v142
  %v144 = vrot.slane %v143, 4
  %v145 = vadd.f32 %v143, %v144
  %v146 = vrot.slane %v145, 2
  %v147 = vadd.f32 %v145, %v146
  %v148 = vrot.slane %v147, 1
  %v149 = vadd.f32 %v147, %v148
  %v150 = vadd.f32 %v140, %v149
  %151 = vst [vmem:[%s5] sm:$0x1] %v150
  %152 = vst [vmem:[%s3] sm:$0xff] %v107
  %153 = vst [vmem:[%s3 + $0x8] sm:$0xff] %v108
  // Predicated region
  $region18: #{demucs_encoder.8} parent=0 // pred_check
    _
  $region19: #{demucs_encoder.8} parent=0 // pred_check_branch
    %155 = sbr.rel (0) target = $region21
  $region20: #{demucs_encoder.8} parent=0 // pred_region
    _
  $region21: #{demucs_encoder.8} parent=0 // pred_fallthru
    _
  // Predicated region
  $region22: #{demucs_encoder.8} parent=0 // pred_check
    _
  $region23: #{demucs_encoder.8} parent=0 // pred_check_branch
    %157 = sbr.rel (0) target = $region25
  $region24: #{demucs_encoder.8} parent=0 // pred_region
    _
  $region25: #{demucs_encoder.8} parent=0 // pred_fallthru
    _
  // Predicated region
  $region26: #{demucs_encoder.8} parent=0 // pred_check
    _
  $region27: #{demucs_encoder.8} parent=0 // pred_check_branch
    %159 = sbr.rel (0) target = $region29
  $region28: #{demucs_encoder.8} parent=0 // pred_region
    _
  $region29: #{demucs_encoder.8} parent=0 // pred_fallthru
    _
  // Predicated region
  $region30: #{demucs_encoder.8} parent=0 // pred_check
    _
  $region31: #{demucs_encoder.8} parent=0 // pred_check_branch
    %161 = sbr.rel (0) target = $region33
  $region32: #{demucs_encoder.8} parent=0 // pred_region
    _
  $region33: #{demucs_encoder.8} parent=0 // pred_fallthru
    _
  // Predicated region
  $region34: #{demucs_encoder.8} parent=0 // pred_check
    _
  $region35: #{demucs_encoder.8} parent=0 // pred_check_branch
    %163 = sbr.rel (0) target = $region37
  $region36: #{demucs_encoder.8} parent=0 // pred_region
    _
  $region37: #{demucs_encoder.8} parent=0 // pred_fallthru
    _
  // Predicated region
  $region38: #{demucs_encoder.8} parent=0 // pred_check
    _
  $region39: #{demucs_encoder.8} parent=0 // pred_check_branch
    %165 = sbr.rel (0) target = $region41
  $region40: #{demucs_encoder.8} parent=0 // pred_region
    _
  $region41: #{demucs_encoder.8} parent=0 // pred_fallthru
    _

// kernel: demucs_encoder.11
$region0: #{demucs_encoder.11}
  #allocation0 [shape = 'u32[]', space=smem, size = 0x4, offset = 0x4, fixed_abs, tag = 'smem constant byte address 0x4 - core index']
  #allocation1 [shape = 'u32[72,128]{1,0:T(1,128)}', space=vmem, size = 0x9000, scoped, tag = 'internal scratch']
  %s0 = inlined_call_operand.vmem [shape: f32[8,128], index: 0, kind: input, shape index: {}, may-alias: {0,3}]
  %s1 = inlined_call_operand.vmem [shape: f32[1,128], index: 1, kind: input, shape index: {}]
  %s2 = inlined_call_operand.vmem [shape: f32[1,128], index: 2, kind: input, shape index: {}]
  %s3 = inlined_call_operand.vmem [shape: f32[8,128], index: 3, kind: output, shape index: {}, may-alias: {0,3}]
  %s4 = sld [smem:[#allocation0]]
  $region22: #{demucs_encoder.11} parent=0
    _
  %s6 = ssub.s32 1, %s4
  %s7 = scalar_select 0, %s6, %s4
  // Predicated region
  $region2: #{demucs_encoder.11} parent=0 // pred_check
    _
  $region3: #{demucs_encoder.11} parent=0 // pred_check_branch
    %9 = sbr.rel (0) target = $region5
  $region4: #{demucs_encoder.11} parent=0 // pred_region
    _
  $region5: #{demucs_encoder.11} parent=0 // pred_fallthru
    _
  // Predicated region
  $region6: #{demucs_encoder.11} parent=0 // pred_check
    _
  $region7: #{demucs_encoder.11} parent=0 // pred_check_branch
    %11 = sbr.rel (0) target = $region9
  $region8: #{demucs_encoder.11} parent=0 // pred_region
    _
  $region9: #{demucs_encoder.11} parent=0 // pred_fallthru
    _
  // Predicated region
  $region10: #{demucs_encoder.11} parent=0 // pred_check
    _
  $region11: #{demucs_encoder.11} parent=0 // pred_check_branch
    %13 = sbr.rel (0) target = $region13
  $region12: #{demucs_encoder.11} parent=0 // pred_region
    _
  $region13: #{demucs_encoder.11} parent=0 // pred_fallthru
    _
  %v14 = vld [vmem:[%s0] sm:$0xff]
  %v15 = vld [vmem:[%s1] sm:$0x1]
  %v17 = vperm.slane %v15, 0
  %v19 = vmul.f32 %v14, %v17
  %v20 = vld [vmem:[%s2] sm:$0x1]
  %v22 = vperm.slane %v20, 0
  %v24 = vadd.f32 %v19, %v22
  %25 = vst [vmem:[%s3] sm:$0xff] %v24
  // Predicated region
  $region14: #{demucs_encoder.11} parent=0 // pred_check
    _
  $region15: #{demucs_encoder.11} parent=0 // pred_check_branch
    %27 = sbr.rel (0) target = $region17
  $region16: #{demucs_encoder.11} parent=0 // pred_region
    _
  $region17: #{demucs_encoder.11} parent=0 // pred_fallthru
    _
  // Predicated region
  $region18: #{demucs_encoder.11} parent=0 // pred_check
    _
  $region19: #{demucs_encoder.11} parent=0 // pred_check_branch
    %29 = sbr.rel (0) target = $region21
  $region20: #{demucs_encoder.11} parent=0 // pred_region
    _
  $region21: #{demucs_encoder.11} parent=0 // pred_fallthru
    _

// kernel: demucs_encoder.10
$region0: #{demucs_encoder.10}
  #allocation0 [shape = 'u32[]', space=smem, size = 0x4, offset = 0x4, fixed_abs, tag = 'smem constant byte address 0x4 - core index']
  #allocation1 [shape = 'u32[72,128]{1,0:T(1,128)}', space=vmem, size = 0x9000, scoped, tag = 'internal scratch']
  %s0 = inlined_call_operand.vmem [shape: bf16[8,128], index: 0, kind: input, shape index: {}]
  %s1 = inlined_call_operand.vmem [shape: bf16[128,128], index: 1, kind: input, shape index: {}]
  %s2 = inlined_call_operand.vmem [shape: f32[1,128], index: 2, kind: input, shape index: {}]
  %s3 = inlined_call_operand.vmem [shape: f32[8,128], index: 3, kind: output, shape index: {0}]
  %s4 = inlined_call_operand.vmem [shape: f32[1,128], index: 4, kind: output, shape index: {1}]
  %s5 = inlined_call_operand.vmem [shape: f32[1,128], index: 5, kind: output, shape index: {2}]
  %6 = xla_tuple %s3, %s4, %s5
  %s7 = sld [smem:[#allocation0]]
  $region42: #{demucs_encoder.10} parent=0
    _
  %s9 = ssub.s32 1, %s7
  %s10 = scalar_select 0, %s9, %s7
  // Predicated region
  $region2: #{demucs_encoder.10} parent=0 // pred_check
    _
  $region3: #{demucs_encoder.10} parent=0 // pred_check_branch
    %12 = sbr.rel (0) target = $region5
  $region4: #{demucs_encoder.10} parent=0 // pred_region
    _
  $region5: #{demucs_encoder.10} parent=0 // pred_fallthru
    _
  // Predicated region
  $region6: #{demucs_encoder.10} parent=0 // pred_check
    _
  $region7: #{demucs_encoder.10} parent=0 // pred_check_branch
    %14 = sbr.rel (0) target = $region9
  $region8: #{demucs_encoder.10} parent=0 // pred_region
    _
  $region9: #{demucs_encoder.10} parent=0 // pred_fallthru
    _
  // Predicated region
  $region10: #{demucs_encoder.10} parent=0 // pred_check
    _
  $region11: #{demucs_encoder.10} parent=0 // pred_check_branch
    %16 = sbr.rel (0) target = $region13
  $region12: #{demucs_encoder.10} parent=0 // pred_region
    _
  $region13: #{demucs_encoder.10} parent=0 // pred_fallthru
    _
  %v17 = vld [vmem:[%s0] sm:$0xf]
  %v18 = vld [vmem:[%s1] sm:$0xf]
  %v19 = vld [vmem:[%s1 + $0x4] sm:$0xf]
  %v20 = vld [vmem:[%s1 + $0x8] sm:$0xf]
  %v21 = vld [vmem:[%s1 + $0xc] sm:$0xf]
  %v22 = vld [vmem:[%s1 + $0x10] sm:$0xf]
  %v23 = vld [vmem:[%s1 + $0x14] sm:$0xf]
  %v24 = vld [vmem:[%s1 + $0x18] sm:$0xf]
  %v25 = vld [vmem:[%s1 + $0x1c] sm:$0xf]
  %v26 = vld [vmem:[%s1 + $0x20] sm:$0xf]
  %v27 = vld [vmem:[%s1 + $0x24] sm:$0xf]
  %v28 = vld [vmem:[%s1 + $0x28] sm:$0xf]
  %v29 = vld [vmem:[%s1 + $0x2c] sm:$0xf]
  %v30 = vld [vmem:[%s1 + $0x30] sm:$0xf]
  %v31 = vld [vmem:[%s1 + $0x34] sm:$0xf]
  %v32 = vld [vmem:[%s1 + $0x38] sm:$0xf]
  %v33 = vld [vmem:[%s1 + $0x3c] sm:$0xf]
  %v34 = vld [vmem:[%s2] sm:$0x1]
  %v36 = vperm.slane %v34, 0
  %v54 = vunpack.c.l.b16 %v18
  %v55 = vunpack.c.l.b16 %v19
  %v56 = vunpack.c.l.b16 %v20
  %v57 = vunpack.c.l.b16 %v21
  %v58 = vunpack.c.l.b16 %v22
  %v59 = vunpack.c.l.b16 %v23
  %v60 = vunpack.c.l.b16 %v24
  %v61 = vunpack.c.l.b16 %v25
  %v62 = vunpack.c.l.b16 %v26
  %v63 = vunpack.c.l.b16 %v27
  %v64 = vunpack.c.l.b16 %v28
  %v65 = vunpack.c.l.b16 %v29
  %v66 = vunpack.c.l.b16 %v30
  %v67 = vunpack.c.l.b16 %v31
  %v68 = vunpack.c.l.b16 %v32
  %v69 = vunpack.c.l.b16 %v33
  %v70 = vpack.c.b16 %v55, %v54
  %v71 = vpack.c.b16 %v57, %v56
  %v72 = vpack.c.b16 %v59, %v58
  %v73 = vpack.c.b16 %v61, %v60
  %v74 = vpack.c.b16 %v63, %v62
  %v75 = vpack.c.b16 %v65, %v64
  %v76 = vpack.c.b16 %v67, %v66
  %v77 = vpack.c.b16 %v69, %v68
  %86 = vmatpush.bf16.msra.mxu0 %v77
  %87 = vmatpush.bf16.msra.mxu0 %v76
  %88 = vmatpush.bf16.msra.mxu0 %v75
  %89 = vmatpush.bf16.msra.mxu0 %v74
  %90 = vmatpush.bf16.msra.mxu0 %v73
  %91 = vmatpush.bf16.msra.mxu0 %v72
  %92 = vmatpush.bf16.msra.mxu0 %v71
  %93 = vmatpush.bf16.msra.mxu0 %v70
  %94 = vmatmul.bf16.gmra.mxu0 %v17
  %v95 = vpop.f32.mrf.mxu0
  %v96 = vadd.f32 %v36, %v95
  %v97 = vpop.f32.mrf.mxu0
  %98 = vdwg.mxu0
  %v99 = vmax.f32 %v96, 0.0
  %s100 = smul.u32 0, 8
  %v101 = vlaneseq
  %v102 = vshrl.u32 %v101, 7
  %v103 = vstv %s100
  %v104 = vadd.s32 %v103, %v102
  %vm105 = vcmp.lt.s32.totalorder %v104, 4
  %v106 = vsel %vm105, 1, 0
  %vm107 = vcmp.eq.s32.totalorder %v106, 1
  %v108 = vsel %vm107, %v99, 0.0
  %p109 = scmp.eq.s32.totalorder 0, 0
  // Predicated region
  $region14: #{demucs_encoder.10} parent=0 // pred_check
    %p110 = pneg %p109
  $region15: #{demucs_encoder.10} parent=0 // pred_check_branch
    %112 = sbr.rel (%p110) target = $region17
  $region16: #{demucs_encoder.10} parent=0 // pred_region
    %113 = vst [vmem:[%s4] sm:$0x1] 0.0
    %114 = vst [vmem:[%s5] sm:$0x1] 0.0
  $region17: #{demucs_encoder.10} parent=0 // pred_fallthru
    _
  %v115 = vld [vmem:[%s4] sm:$0x1]
  %v116 = vrot.slane %v108, 4
  %v117 = vadd.f32 %v108, %v116
  %v118 = vrot.slane %v117, 2
  %v119 = vadd.f32 %v117, %v118
  %v120 = vrot.slane %v119, 1
  %v121 = vadd.f32 %v119, %v120
  %v122 = vadd.f32 %v115, %v121
  %123 = vst [vmem:[%s4] sm:$0x1] %v122
  %v124 = vld [vmem:[%s5] sm:$0x1]
  %v125 = vmul.f32 %v108, %v108
  %v126 = vrot.slane %v125, 4
  %v127 = vadd.f32 %v125, %v126
  %v128 = vrot.slane %v127, 2
  %v129 = vadd.f32 %v127, %v128
  %v130 = vrot.slane %v129, 1
  %v131 = vadd.f32 %v129, %v130
  %v132 = vadd.f32 %v124, %v131
  %133 = vst [vmem:[%s5] sm:$0x1] %v132
  %134 = vst [vmem:[%s3] sm:$0xff] %v99
  // Predicated region
  $region18: #{demucs_encoder.10} parent=0 // pred_check
    _
  $region19: #{demucs_encoder.10} parent=0 // pred_check_branch
    %136 = sbr.rel (0) target = $region21
  $region20: #{demucs_encoder.10} parent=0 // pred_region
    _
  $region21: #{demucs_encoder.10} parent=0 // pred_fallthru
    _
  // Predicated region
  $region22: #{demucs_encoder.10} parent=0 // pred_check
    _
  $region23: #{demucs_encoder.10} parent=0 // pred_check_branch
    %138 = sbr.rel (0) target = $region25
  $region24: #{demucs_encoder.10} parent=0 // pred_region
    _
  $region25: #{demucs_encoder.10} parent=0 // pred_fallthru
    _
  // Predicated region
  $region26: #{demucs_encoder.10} parent=0 // pred_check
    _
  $region27: #{demucs_encoder.10} parent=0 // pred_check_branch
    %140 = sbr.rel (0) target = $region29
  $region28: #{demucs_encoder.10} parent=0 // pred_region
    _
  $region29: #{demucs_encoder.10} parent=0 // pred_fallthru
    _
  // Predicated region
  $region30: #{demucs_encoder.10} parent=0 // pred_check
    _
  $region31: #{demucs_encoder.10} parent=0 // pred_check_branch
    %142 = sbr.rel (0) target = $region33
  $region32: #{demucs_encoder.10} parent=0 // pred_region
    _
  $region33: #{demucs_encoder.10} parent=0 // pred_fallthru
    _
  // Predicated region
  $region34: #{demucs_encoder.10} parent=0 // pred_check
    _
  $region35: #{demucs_encoder.10} parent=0 // pred_check_branch
    %144 = sbr.rel (0) target = $region37
  $region36: #{demucs_encoder.10} parent=0 // pred_region
    _
  $region37: #{demucs_encoder.10} parent=0 // pred_fallthru
    _
  // Predicated region
  $region38: #{demucs_encoder.10} parent=0 // pred_check
    _
  $region39: #{demucs_encoder.10} parent=0 // pred_check_branch
    %146 = sbr.rel (0) target = $region41
  $region40: #{demucs_encoder.10} parent=0 // pred_region
    _
  $region41: #{demucs_encoder.10} parent=0 // pred_fallthru
    _

</llo_original>
